<compile_context>
chip_gen: v6e
topology: v6e:2x2x1
jax: 0.10.0
libtpu: 0.0.40
codegen_flags: <defaults>
</compile_context>

<pallas_src>
import jax
import jax.numpy as jnp
from jax import lax
from jax.experimental import pallas as pl
from jax.experimental.pallas import tpu as pltpu


# PyTorch stores gate rows in order (i, f, g, o).  We pack fused columns as
# [i | f | o | g] so all sigmoid gates are contiguous.
_GATE_ORDER = (0, 1, 3, 2)   # source (PyTorch) gate index for each packed block


def _bilstm_kernel(x_ref, wih_ref, whh_ref, b_ref,
                   out_ref, hn_ref, cn_ref,
                   xcat_ref, gx_ref, hist_ref):
    """Fused bidirectional LSTM.

    Inputs (VMEM):
      x_ref    : (B, T, D)    batch-first input
      wih_ref  : (2D, 8H)     block-diagonal fused W_ih^T, columns [i|f|o|g],
                              each 2H block = [fwd H | bwd H]
      whh_ref  : (2H, 8H)     block-diagonal fused W_hh^T, same column layout
      b_ref    : (1, 8H)      fused bias (b_ih + b_hh), same column layout
    Outputs (VMEM):
      out_ref  : (B, T*2H)    lane-dense output slab (row-major == (B,T,2H))
      hn_ref   : (2, B, H)    final hidden state per direction
      cn_ref   : (2, B, H)    final cell state per direction
    Scratch (VMEM):
      xcat_ref : (T*B, 2D)    staged [x_t | x_{T-1-t}] (time-major)
      gx_ref   : (T*B, 8H)    precomputed input-gate contributions
      hist_ref : (T*B, 2H)    per-step hidden states (step order, not reversed)
    """
    B, T, D = x_ref.shape
    H = whh_ref.shape[0] // 2
    G = 2 * H            # width of one packed gate block [fwd H | bwd H]
    f32 = jnp.float32

    # ---- 0) single staging pass: batch-first x -> time-major [x_t | x_{T-1-t}]
    xall = x_ref[...]                                     # (B, T, D)
    for t in range(T):                                    # static unroll, prologue
        xcat_ref[t * B:(t + 1) * B, :D] = xall[:, t, :]
        xcat_ref[t * B:(t + 1) * B, D:] = xall[:, T - 1 - t, :]

    # ---- 1) hoisted input projection: ONE GEMM for both directions, bias fused
    gx_ref[...] = (jnp.dot(xcat_ref[...], wih_ref[...],
                           preferred_element_type=f32) + b_ref[...])   # (T*B, 8H)

    # ---- 2) fused recurrence (both directions), h/c carried in vregs ----------
    whh = whh_ref[...]                                    # (2H, 8H) hoisted out of loop
    # TODO(synk): whh could be pinned in the MXU across the unrolled steps via
    # pltpu.matmul_push_rhs / matmul_acc_lhs / matmul_pop; jnp.dot kept for
    # robustness/portability across chip generations.

    def step(t, carry):
        h, c = carry                                      # (B, 2H) each
        row = pl.multiple_of(t * B, B)
        gates = (jnp.dot(h, whh, preferred_element_type=f32)
                 + gx_ref[pl.ds(row, B), :])              # (B, 8H)
        sig = jax.nn.sigmoid(gates[:, :3 * G])            # one EUP pass over [i|f|o]
        i_g = sig[:, 0 * G:1 * G]
        f_g = sig[:, 1 * G:2 * G]
        o_g = sig[:, 2 * G:3 * G]
        g_g = jnp.tanh(gates[:, 3 * G:4 * G])
        c_new = f_g * c + i_g * g_g
        h_new = o_g * jnp.tanh(c_new)
        hist_ref[pl.ds(row, B), :] = h_new                # single full-width store
        return (h_new, c_new)

    zeros = jnp.zeros((B, G), f32)
    h_fin, c_fin = lax.fori_loop(0, T, step, (zeros, zeros), unroll=True)

    # ---- 3) finalize: final states + lane-dense output slab -------------------
    hn_ref[0] = h_fin[:, :H]          # forward final hidden
    hn_ref[1] = h_fin[:, H:]          # backward final hidden
    cn_ref[0] = c_fin[:, :H]
    cn_ref[1] = c_fin[:, H:]

    hist = hist_ref[...]                                  # (T*B, 2H)
    pieces = []
    for t in range(T):
        pieces.append(hist[t * B:(t + 1) * B, :H])               # fwd output @ t
        pieces.append(hist[(T - 1 - t) * B:(T - t) * B, H:])     # bwd output @ t
    out_ref[...] = jnp.concatenate(pieces, axis=-1)       # (B, T*2H) dense store


def _pack_blockdiag(wf_t, wb_t, H):
    """Build the (Kf+Kb, 8H) block-diagonal fused weight with columns
    [i|f|o|g], each block = [fwd H | bwd H]."""
    f32 = jnp.float32
    Kf, Kb = wf_t.shape[0], wb_t.shape[0]
    zf = jnp.zeros((Kf, H), f32)
    zb = jnp.zeros((Kb, H), f32)
    blocks = []
    for src in _GATE_ORDER:
        top = jnp.concatenate([wf_t[:, src * H:(src + 1) * H], zf], axis=1)   # (Kf, 2H)
        bot = jnp.concatenate([zb, wb_t[:, src * H:(src + 1) * H]], axis=1)   # (Kb, 2H)
        blocks.append(jnp.concatenate([top, bot], axis=0))                    # (Kf+Kb, 2H)
    return jnp.concatenate(blocks, axis=1)                                    # (Kf+Kb, 8H)


def bilstm_forward(x, w_ih, w_hh, b_ih, b_hh):
    """x: (B, T, D) float32. Weights follow PyTorch nn.LSTM layout:
       w_ih: (2, 4H, D), w_hh: (2, 4H, H), b_ih/b_hh: (2, 4H)."""
    B, T, D = x.shape
    H = w_ih.shape[1] // 4
    f32 = jnp.float32

    x = x.astype(f32)
    wihf = jnp.transpose(w_ih[0]).astype(f32)   # (D, 4H)
    wihb = jnp.transpose(w_ih[1]).astype(f32)   # (D, 4H)
    whhf = jnp.transpose(w_hh[0]).astype(f32)   # (H, 4H)
    whhb = jnp.transpose(w_hh[1]).astype(f32)   # (H, 4H)
    bsum = (b_ih + b_hh).astype(f32)            # (2, 4H)

    wih_fused = _pack_blockdiag(wihf, wihb, H)  # (2D, 8H)
    whh_fused = _pack_blockdiag(whhf, whhb, H)  # (2H, 8H)
    bias_parts = []
    for src in _GATE_ORDER:
        bias_parts.append(bsum[0, src * H:(src + 1) * H])
        bias_parts.append(bsum[1, src * H:(src + 1) * H])
    bias_fused = jnp.concatenate(bias_parts).reshape(1, 8 * H)   # (1, 8H)

    vmem = pl.BlockSpec(memory_space=pltpu.MemorySpace.VMEM)
    out_flat, h_n, c_n = pl.pallas_call(
        _bilstm_kernel,
        out_shape=(
            jax.ShapeDtypeStruct((B, T * 2 * H), f32),
            jax.ShapeDtypeStruct((2, B, H), f32),
            jax.ShapeDtypeStruct((2, B, H), f32),
        ),
        in_specs=[vmem] * 4,
        out_specs=(vmem, vmem, vmem),
        scratch_shapes=[
            pltpu.VMEM((T * B, 2 * D), f32),    # staged [x_t | x_{T-1-t}]
            pltpu.VMEM((T * B, 8 * H), f32),    # fused input-gate contributions
            pltpu.VMEM((T * B, 2 * H), f32),    # per-step hidden-state history
        ],
        compiler_params=pltpu.CompilerParams(vmem_limit_bytes=32 * 1024 * 1024),
    )(x, wih_fused, whh_fused, bias_fused)

    out = out_flat.reshape(B, T, 2 * H)   # free: same row-major layout
    return out, (h_n, c_n)


def _reference_bilstm(x, w_ih, w_hh, b_ih, b_hh):
    """Pure-JAX reference (same math, no Pallas) for a correctness check."""
    B, T, D = x.shape
    H = w_ih.shape[1] // 4

    def run_dir(d, xs):
        def cell(carry, x_t):
            h, c = carry
            gates = x_t @ w_ih[d].T + h @ w_hh[d].T + b_ih[d] + b_hh[d]
            i = jax.nn.sigmoid(gates[:, 0 * H:1 * H])
            f = jax.nn.sigmoid(gates[:, 1 * H:2 * H])
            g = jnp.tanh(gates[:, 2 * H:3 * H])
            o = jax.nn.sigmoid(gates[:, 3 * H:4 * H])
            c_new = f * c + i * g
            h_new = o * jnp.tanh(c_new)
            return (h_new, c_new), h_new

        init = (jnp.zeros((B, H), jnp.float32), jnp.zeros((B, H), jnp.float32))
        (h_f, c_f), hs = lax.scan(cell, init, xs)
        return hs, h_f, c_f

    x_tm = jnp.transpose(x, (1, 0, 2))
    hs_f, hf_f, cf_f = run_dir(0, x_tm)
    hs_b, hf_b, cf_b = run_dir(1, x_tm[::-1])
    hs_b = hs_b[::-1]
    out = jnp.concatenate([hs_f, hs_b], axis=-1)
    out = jnp.transpose(out, (1, 0, 2))
    h_n = jnp.stack([hf_f, hf_b])
    c_n = jnp.stack([cf_f, cf_b])
    return out, (h_n, c_n)


if __name__ == "__main__":
    # Small shapes consistent with the module: batch=2, seq=8, input_dim=4,
    # hidden_dim=32  ->  per-direction hidden H=16, fused gate width 8H=128.
    B, T, D, HIDDEN = 2, 8, 4, 32
    H = HIDDEN // 2

    key = jax.random.PRNGKey(0)
    k_x, k1, k2, k3, k4 = jax.random.split(key, 5)

    bound = 1.0 / (H ** 0.5)
    x = jax.random.normal(k_x, (B, T, D), dtype=jnp.float32)
    w_ih = jax.random.uniform(k1, (2, 4 * H, D), jnp.float32, -bound, bound)
    w_hh = jax.random.uniform(k2, (2, 4 * H, H), jnp.float32, -bound, bound)
    b_ih = jax.random.uniform(k3, (2, 4 * H), jnp.float32, -bound, bound)
    b_hh = jax.random.uniform(k4, (2, 4 * H), jnp.float32, -bound, bound)

    out, (h_n, c_n) = bilstm_forward(x, w_ih, w_hh, b_ih, b_hh)
    jax.block_until_ready((out, h_n, c_n))

    # Sanity check against a pure-JAX reference.
    out_ref, (hn_ref, cn_ref) = _reference_bilstm(x, w_ih, w_hh, b_ih, b_hh)
    assert out.shape == (B, T, HIDDEN)
    assert h_n.shape == (2, B, H) and c_n.shape == (2, B, H)
    import numpy as np
    np.testing.assert_allclose(np.asarray(out), np.asarray(out_ref), rtol=1e-4, atol=1e-4)
    np.testing.assert_allclose(np.asarray(h_n), np.asarray(hn_ref), rtol=1e-4, atol=1e-4)
    np.testing.assert_allclose(np.asarray(c_n), np.asarray(cn_ref), rtol=1e-4, atol=1e-4)

    print("KERNEL_OK")
</pallas_src>

<mosaic_0001>
module attributes {stable_mosaic.version = 11 : i64} {
  func.func @_bilstm_kernel(%arg0: memref<2x8x4xf32, #tpu.memory_space<vmem>>, %arg1: memref<8x128xf32, #tpu.memory_space<vmem>>, %arg2: memref<32x128xf32, #tpu.memory_space<vmem>>, %arg3: memref<1x128xf32, #tpu.memory_space<vmem>>, %arg4: memref<2x256xf32, #tpu.memory_space<vmem>>, %arg5: memref<2x2x16xf32, #tpu.memory_space<vmem>>, %arg6: memref<2x2x16xf32, #tpu.memory_space<vmem>>, %arg7: memref<16x8xf32, #tpu.memory_space<vmem>>, %arg8: memref<16x128xf32, #tpu.memory_space<vmem>>, %arg9: memref<16x32xf32, #tpu.memory_space<vmem>>) attributes {dimension_semantics = [], scalar_prefetch = 0 : i64, scratch_operands = 3 : i64, tpu.core_type = #tpu.core_type<tc>} {
    %c0 = arith.constant 0 : index
    %c0_0 = arith.constant 0 : index
    %c0_1 = arith.constant 0 : index
    %0 = vector.load %arg0[%c0, %c0_0, %c0_1] : memref<2x8x4xf32, #tpu.memory_space<vmem>>, vector<2x8x4xf32>
    %1 = vector.extract_strided_slice %0 {offsets = [0, 0, 0], sizes = [2, 1, 4], strides = [1, 1, 1]} : vector<2x8x4xf32> to vector<2x1x4xf32>
    %2 = vector.shape_cast %1 : vector<2x1x4xf32> to vector<2x4xf32>
    %c0_2 = arith.constant 0 : index
    %c0_3 = arith.constant 0 : index
    %3 = vector.load %arg7[%c0_2, %c0_3] : memref<16x8xf32, #tpu.memory_space<vmem>>, vector<2x4xf32>
    tpu.vector_store %arg7[%c0_2, %c0_3], %2 {strides = array<i32>} : memref<16x8xf32, #tpu.memory_space<vmem>>, vector<2x4xf32>,
    %4 = vector.extract_strided_slice %0 {offsets = [0, 7, 0], sizes = [2, 1, 4], strides = [1, 1, 1]} : vector<2x8x4xf32> to vector<2x1x4xf32>
    %5 = vector.shape_cast %4 : vector<2x1x4xf32> to vector<2x4xf32>
    %c0_4 = arith.constant 0 : index
    %c4 = arith.constant 4 : index
    %6 = vector.load %arg7[%c0_4, %c4] : memref<16x8xf32, #tpu.memory_space<vmem>>, vector<2x4xf32>
    tpu.vector_store %arg7[%c0_4, %c4], %5 {strides = array<i32>} : memref<16x8xf32, #tpu.memory_space<vmem>>, vector<2x4xf32>,
    %7 = vector.extract_strided_slice %0 {offsets = [0, 1, 0], sizes = [2, 1, 4], strides = [1, 1, 1]} : vector<2x8x4xf32> to vector<2x1x4xf32>
    %8 = vector.shape_cast %7 : vector<2x1x4xf32> to vector<2x4xf32>
    %c2 = arith.constant 2 : index
    %c0_5 = arith.constant 0 : index
    %9 = vector.load %arg7[%c2, %c0_5] : memref<16x8xf32, #tpu.memory_space<vmem>>, vector<2x4xf32>
    tpu.vector_store %arg7[%c2, %c0_5], %8 {strides = array<i32>} : memref<16x8xf32, #tpu.memory_space<vmem>>, vector<2x4xf32>,
    %10 = vector.extract_strided_slice %0 {offsets = [0, 6, 0], sizes = [2, 1, 4], strides = [1, 1, 1]} : vector<2x8x4xf32> to vector<2x1x4xf32>
    %11 = vector.shape_cast %10 : vector<2x1x4xf32> to vector<2x4xf32>
    %c2_6 = arith.constant 2 : index
    %c4_7 = arith.constant 4 : index
    %12 = vector.load %arg7[%c2_6, %c4_7] : memref<16x8xf32, #tpu.memory_space<vmem>>, vector<2x4xf32>
    tpu.vector_store %arg7[%c2_6, %c4_7], %11 {strides = array<i32>} : memref<16x8xf32, #tpu.memory_space<vmem>>, vector<2x4xf32>,
    %13 = vector.extract_strided_slice %0 {offsets = [0, 2, 0], sizes = [2, 1, 4], strides = [1, 1, 1]} : vector<2x8x4xf32> to vector<2x1x4xf32>
    %14 = vector.shape_cast %13 : vector<2x1x4xf32> to vector<2x4xf32>
    %c4_8 = arith.constant 4 : index
    %c0_9 = arith.constant 0 : index
    %15 = vector.load %arg7[%c4_8, %c0_9] : memref<16x8xf32, #tpu.memory_space<vmem>>, vector<2x4xf32>
    tpu.vector_store %arg7[%c4_8, %c0_9], %14 {strides = array<i32>} : memref<16x8xf32, #tpu.memory_space<vmem>>, vector<2x4xf32>,
    %16 = vector.extract_strided_slice %0 {offsets = [0, 5, 0], sizes = [2, 1, 4], strides = [1, 1, 1]} : vector<2x8x4xf32> to vector<2x1x4xf32>
    %17 = vector.shape_cast %16 : vector<2x1x4xf32> to vector<2x4xf32>
    %c4_10 = arith.constant 4 : index
    %c4_11 = arith.constant 4 : index
    %18 = vector.load %arg7[%c4_10, %c4_11] : memref<16x8xf32, #tpu.memory_space<vmem>>, vector<2x4xf32>
    tpu.vector_store %arg7[%c4_10, %c4_11], %17 {strides = array<i32>} : memref<16x8xf32, #tpu.memory_space<vmem>>, vector<2x4xf32>,
    %19 = vector.extract_strided_slice %0 {offsets = [0, 3, 0], sizes = [2, 1, 4], strides = [1, 1, 1]} : vector<2x8x4xf32> to vector<2x1x4xf32>
    %20 = vector.shape_cast %19 : vector<2x1x4xf32> to vector<2x4xf32>
    %c6 = arith.constant 6 : index
    %c0_12 = arith.constant 0 : index
    %21 = vector.load %arg7[%c6, %c0_12] : memref<16x8xf32, #tpu.memory_space<vmem>>, vector<2x4xf32>
    tpu.vector_store %arg7[%c6, %c0_12], %20 {strides = array<i32>} : memref<16x8xf32, #tpu.memory_space<vmem>>, vector<2x4xf32>,
    %22 = vector.extract_strided_slice %0 {offsets = [0, 4, 0], sizes = [2, 1, 4], strides = [1, 1, 1]} : vector<2x8x4xf32> to vector<2x1x4xf32>
    %23 = vector.shape_cast %22 : vector<2x1x4xf32> to vector<2x4xf32>
    %c6_13 = arith.constant 6 : index
    %c4_14 = arith.constant 4 : index
    %24 = vector.load %arg7[%c6_13, %c4_14] : memref<16x8xf32, #tpu.memory_space<vmem>>, vector<2x4xf32>
    tpu.vector_store %arg7[%c6_13, %c4_14], %23 {strides = array<i32>} : memref<16x8xf32, #tpu.memory_space<vmem>>, vector<2x4xf32>,
    %25 = vector.extract_strided_slice %0 {offsets = [0, 4, 0], sizes = [2, 1, 4], strides = [1, 1, 1]} : vector<2x8x4xf32> to vector<2x1x4xf32>
    %26 = vector.shape_cast %25 : vector<2x1x4xf32> to vector<2x4xf32>
    %c8 = arith.constant 8 : index
    %c0_15 = arith.constant 0 : index
    %27 = vector.load %arg7[%c8, %c0_15] : memref<16x8xf32, #tpu.memory_space<vmem>>, vector<2x4xf32>
    tpu.vector_store %arg7[%c8, %c0_15], %26 {strides = array<i32>} : memref<16x8xf32, #tpu.memory_space<vmem>>, vector<2x4xf32>,
    %28 = vector.extract_strided_slice %0 {offsets = [0, 3, 0], sizes = [2, 1, 4], strides = [1, 1, 1]} : vector<2x8x4xf32> to vector<2x1x4xf32>
    %29 = vector.shape_cast %28 : vector<2x1x4xf32> to vector<2x4xf32>
    %c8_16 = arith.constant 8 : index
    %c4_17 = arith.constant 4 : index
    %30 = vector.load %arg7[%c8_16, %c4_17] : memref<16x8xf32, #tpu.memory_space<vmem>>, vector<2x4xf32>
    tpu.vector_store %arg7[%c8_16, %c4_17], %29 {strides = array<i32>} : memref<16x8xf32, #tpu.memory_space<vmem>>, vector<2x4xf32>,
    %31 = vector.extract_strided_slice %0 {offsets = [0, 5, 0], sizes = [2, 1, 4], strides = [1, 1, 1]} : vector<2x8x4xf32> to vector<2x1x4xf32>
    %32 = vector.shape_cast %31 : vector<2x1x4xf32> to vector<2x4xf32>
    %c10 = arith.constant 10 : index
    %c0_18 = arith.constant 0 : index
    %33 = vector.load %arg7[%c10, %c0_18] : memref<16x8xf32, #tpu.memory_space<vmem>>, vector<2x4xf32>
    tpu.vector_store %arg7[%c10, %c0_18], %32 {strides = array<i32>} : memref<16x8xf32, #tpu.memory_space<vmem>>, vector<2x4xf32>,
    %34 = vector.extract_strided_slice %0 {offsets = [0, 2, 0], sizes = [2, 1, 4], strides = [1, 1, 1]} : vector<2x8x4xf32> to vector<2x1x4xf32>
    %35 = vector.shape_cast %34 : vector<2x1x4xf32> to vector<2x4xf32>
    %c10_19 = arith.constant 10 : index
    %c4_20 = arith.constant 4 : index
    %36 = vector.load %arg7[%c10_19, %c4_20] : memref<16x8xf32, #tpu.memory_space<vmem>>, vector<2x4xf32>
    tpu.vector_store %arg7[%c10_19, %c4_20], %35 {strides = array<i32>} : memref<16x8xf32, #tpu.memory_space<vmem>>, vector<2x4xf32>,
    %37 = vector.extract_strided_slice %0 {offsets = [0, 6, 0], sizes = [2, 1, 4], strides = [1, 1, 1]} : vector<2x8x4xf32> to vector<2x1x4xf32>
    %38 = vector.shape_cast %37 : vector<2x1x4xf32> to vector<2x4xf32>
    %c12 = arith.constant 12 : index
    %c0_21 = arith.constant 0 : index
    %39 = vector.load %arg7[%c12, %c0_21] : memref<16x8xf32, #tpu.memory_space<vmem>>, vector<2x4xf32>
    tpu.vector_store %arg7[%c12, %c0_21], %38 {strides = array<i32>} : memref<16x8xf32, #tpu.memory_space<vmem>>, vector<2x4xf32>,
    %40 = vector.extract_strided_slice %0 {offsets = [0, 1, 0], sizes = [2, 1, 4], strides = [1, 1, 1]} : vector<2x8x4xf32> to vector<2x1x4xf32>
    %41 = vector.shape_cast %40 : vector<2x1x4xf32> to vector<2x4xf32>
    %c12_22 = arith.constant 12 : index
    %c4_23 = arith.constant 4 : index
    %42 = vector.load %arg7[%c12_22, %c4_23] : memref<16x8xf32, #tpu.memory_space<vmem>>, vector<2x4xf32>
    tpu.vector_store %arg7[%c12_22, %c4_23], %41 {strides = array<i32>} : memref<16x8xf32, #tpu.memory_space<vmem>>, vector<2x4xf32>,
    %43 = vector.extract_strided_slice %0 {offsets = [0, 7, 0], sizes = [2, 1, 4], strides = [1, 1, 1]} : vector<2x8x4xf32> to vector<2x1x4xf32>
    %44 = vector.shape_cast %43 : vector<2x1x4xf32> to vector<2x4xf32>
    %c14 = arith.constant 14 : index
    %c0_24 = arith.constant 0 : index
    %45 = vector.load %arg7[%c14, %c0_24] : memref<16x8xf32, #tpu.memory_space<vmem>>, vector<2x4xf32>
    tpu.vector_store %arg7[%c14, %c0_24], %44 {strides = array<i32>} : memref<16x8xf32, #tpu.memory_space<vmem>>, vector<2x4xf32>,
    %46 = vector.extract_strided_slice %0 {offsets = [0, 0, 0], sizes = [2, 1, 4], strides = [1, 1, 1]} : vector<2x8x4xf32> to vector<2x1x4xf32>
    %47 = vector.shape_cast %46 : vector<2x1x4xf32> to vector<2x4xf32>
    %c14_25 = arith.constant 14 : index
    %c4_26 = arith.constant 4 : index
    %48 = vector.load %arg7[%c14_25, %c4_26] : memref<16x8xf32, #tpu.memory_space<vmem>>, vector<2x4xf32>
    tpu.vector_store %arg7[%c14_25, %c4_26], %47 {strides = array<i32>} : memref<16x8xf32, #tpu.memory_space<vmem>>, vector<2x4xf32>,
    %c0_27 = arith.constant 0 : index
    %c0_28 = arith.constant 0 : index
    %49 = vector.load %arg7[%c0_27, %c0_28] : memref<16x8xf32, #tpu.memory_space<vmem>>, vector<16x8xf32>
    %c0_29 = arith.constant 0 : index
    %c0_30 = arith.constant 0 : index
    %50 = vector.load %arg1[%c0_29, %c0_30] : memref<8x128xf32, #tpu.memory_space<vmem>>, vector<8x128xf32>
    %cst = arith.constant dense<0.000000e+00> : vector<16x128xf32>
    %51 = tpu.matmul %49, %50, %cst {dimension_numbers = #tpu.dot_dimension_numbers<[1], [0], [0], [1], [0, 0, 1, 1], [], []>} : vector<16x8xf32>, vector<8x128xf32>, vector<16x128xf32> -> vector<16x128xf32>
    %c0_31 = arith.constant 0 : index
    %c0_32 = arith.constant 0 : index
    %52 = vector.load %arg3[%c0_31, %c0_32] : memref<1x128xf32, #tpu.memory_space<vmem>>, vector<1x128xf32>
    %53 = vector.broadcast %52 : vector<1x128xf32> to vector<16x128xf32>
    %54 = arith.addf %51, %53 : vector<16x128xf32>
    %c0_33 = arith.constant 0 : index
    %c0_34 = arith.constant 0 : index
    %55 = vector.load %arg8[%c0_33, %c0_34] : memref<16x128xf32, #tpu.memory_space<vmem>>, vector<16x128xf32>
    tpu.vector_store %arg8[%c0_33, %c0_34], %54 {strides = array<i32>} : memref<16x128xf32, #tpu.memory_space<vmem>>, vector<16x128xf32>,
    %c0_35 = arith.constant 0 : index
    %c0_36 = arith.constant 0 : index
    %56 = vector.load %arg2[%c0_35, %c0_36] : memref<32x128xf32, #tpu.memory_space<vmem>>, vector<32x128xf32>
    %cst_37 = arith.constant 0.000000e+00 : f32
    %57 = vector.broadcast %cst_37 : f32 to vector<2x32xf32>
    %c0_i32 = arith.constant 0 : i32
    %c2_i32 = arith.constant 2 : i32
    %58 = arith.muli %c0_i32, %c2_i32 : i32
    %59 = tpu.assume_multiple %58, 2 : i32
    %cst_38 = arith.constant dense<0.000000e+00> : vector<2x128xf32>
    %60 = tpu.matmul %57, %56, %cst_38 {dimension_numbers = #tpu.dot_dimension_numbers<[1], [0], [0], [1], [0, 0, 1, 1], [], []>} : vector<2x32xf32>, vector<32x128xf32>, vector<2x128xf32> -> vector<2x128xf32>
    %61 = arith.index_cast %59 : i32 to index
    %c0_39 = arith.constant 0 : index
    %62 = vector.load %arg8[%61, %c0_39] : memref<16x128xf32, #tpu.memory_space<vmem>>, vector<2x128xf32>
    %63 = arith.addf %60, %62 : vector<2x128xf32>
    %64 = vector.extract_strided_slice %63 {offsets = [0, 0], sizes = [2, 96], strides = [1, 1]} : vector<2x128xf32> to vector<2x96xf32>
    %65 = arith.negf %64 : vector<2x96xf32>
    %66 = math.exp %65 : vector<2x96xf32>
    %cst_40 = arith.constant 1.000000e+00 : f32
    %67 = vector.broadcast %cst_40 : f32 to vector<2x96xf32>
    %68 = arith.addf %67, %66 : vector<2x96xf32>
    %69 = arith.divf %67, %68 : vector<2x96xf32>
    %70 = vector.extract_strided_slice %69 {offsets = [0, 0], sizes = [2, 32], strides = [1, 1]} : vector<2x96xf32> to vector<2x32xf32>
    %71 = vector.extract_strided_slice %69 {offsets = [0, 32], sizes = [2, 32], strides = [1, 1]} : vector<2x96xf32> to vector<2x32xf32>
    %72 = vector.extract_strided_slice %69 {offsets = [0, 64], sizes = [2, 32], strides = [1, 1]} : vector<2x96xf32> to vector<2x32xf32>
    %73 = vector.extract_strided_slice %63 {offsets = [0, 96], sizes = [2, 32], strides = [1, 1]} : vector<2x128xf32> to vector<2x32xf32>
    %74 = math.tanh %73 : vector<2x32xf32>
    %75 = arith.mulf %71, %57 : vector<2x32xf32>
    %76 = arith.mulf %70, %74 : vector<2x32xf32>
    %77 = arith.addf %75, %76 : vector<2x32xf32>
    %78 = math.tanh %77 : vector<2x32xf32>
    %79 = arith.mulf %72, %78 : vector<2x32xf32>
    %80 = arith.index_cast %59 : i32 to index
    %c0_41 = arith.constant 0 : index
    %81 = vector.load %arg9[%80, %c0_41] : memref<16x32xf32, #tpu.memory_space<vmem>>, vector<2x32xf32>
    tpu.vector_store %arg9[%80, %c0_41], %79 {strides = array<i32>} : memref<16x32xf32, #tpu.memory_space<vmem>>, vector<2x32xf32>,
    %c1_i32 = arith.constant 1 : i32
    %c2_i32_42 = arith.constant 2 : i32
    %82 = arith.muli %c1_i32, %c2_i32_42 : i32
    %83 = tpu.assume_multiple %82, 2 : i32
    %cst_43 = arith.constant dense<0.000000e+00> : vector<2x128xf32>
    %84 = tpu.matmul %79, %56, %cst_43 {dimension_numbers = #tpu.dot_dimension_numbers<[1], [0], [0], [1], [0, 0, 1, 1], [], []>} : vector<2x32xf32>, vector<32x128xf32>, vector<2x128xf32> -> vector<2x128xf32>
    %85 = arith.index_cast %83 : i32 to index
    %c0_44 = arith.constant 0 : index
    %86 = vector.load %arg8[%85, %c0_44] : memref<16x128xf32, #tpu.memory_space<vmem>>, vector<2x128xf32>
    %87 = arith.addf %84, %86 : vector<2x128xf32>
    %88 = vector.extract_strided_slice %87 {offsets = [0, 0], sizes = [2, 96], strides = [1, 1]} : vector<2x128xf32> to vector<2x96xf32>
    %89 = arith.negf %88 : vector<2x96xf32>
    %90 = math.exp %89 : vector<2x96xf32>
    %cst_45 = arith.constant 1.000000e+00 : f32
    %91 = vector.broadcast %cst_45 : f32 to vector<2x96xf32>
    %92 = arith.addf %91, %90 : vector<2x96xf32>
    %93 = arith.divf %91, %92 : vector<2x96xf32>
    %94 = vector.extract_strided_slice %93 {offsets = [0, 0], sizes = [2, 32], strides = [1, 1]} : vector<2x96xf32> to vector<2x32xf32>
    %95 = vector.extract_strided_slice %93 {offsets = [0, 32], sizes = [2, 32], strides = [1, 1]} : vector<2x96xf32> to vector<2x32xf32>
    %96 = vector.extract_strided_slice %93 {offsets = [0, 64], sizes = [2, 32], strides = [1, 1]} : vector<2x96xf32> to vector<2x32xf32>
    %97 = vector.extract_strided_slice %87 {offsets = [0, 96], sizes = [2, 32], strides = [1, 1]} : vector<2x128xf32> to vector<2x32xf32>
    %98 = math.tanh %97 : vector<2x32xf32>
    %99 = arith.mulf %95, %77 : vector<2x32xf32>
    %100 = arith.mulf %94, %98 : vector<2x32xf32>
    %101 = arith.addf %99, %100 : vector<2x32xf32>
    %102 = math.tanh %101 : vector<2x32xf32>
    %103 = arith.mulf %96, %102 : vector<2x32xf32>
    %104 = arith.index_cast %83 : i32 to index
    %c0_46 = arith.constant 0 : index
    %105 = vector.load %arg9[%104, %c0_46] : memref<16x32xf32, #tpu.memory_space<vmem>>, vector<2x32xf32>
    tpu.vector_store %arg9[%104, %c0_46], %103 {strides = array<i32>} : memref<16x32xf32, #tpu.memory_space<vmem>>, vector<2x32xf32>,
    %c2_i32_47 = arith.constant 2 : i32
    %c2_i32_48 = arith.constant 2 : i32
    %106 = arith.muli %c2_i32_47, %c2_i32_48 : i32
    %107 = tpu.assume_multiple %106, 2 : i32
    %cst_49 = arith.constant dense<0.000000e+00> : vector<2x128xf32>
    %108 = tpu.matmul %103, %56, %cst_49 {dimension_numbers = #tpu.dot_dimension_numbers<[1], [0], [0], [1], [0, 0, 1, 1], [], []>} : vector<2x32xf32>, vector<32x128xf32>, vector<2x128xf32> -> vector<2x128xf32>
    %109 = arith.index_cast %107 : i32 to index
    %c0_50 = arith.constant 0 : index
    %110 = vector.load %arg8[%109, %c0_50] : memref<16x128xf32, #tpu.memory_space<vmem>>, vector<2x128xf32>
    %111 = arith.addf %108, %110 : vector<2x128xf32>
    %112 = vector.extract_strided_slice %111 {offsets = [0, 0], sizes = [2, 96], strides = [1, 1]} : vector<2x128xf32> to vector<2x96xf32>
    %113 = arith.negf %112 : vector<2x96xf32>
    %114 = math.exp %113 : vector<2x96xf32>
    %cst_51 = arith.constant 1.000000e+00 : f32
    %115 = vector.broadcast %cst_51 : f32 to vector<2x96xf32>
    %116 = arith.addf %115, %114 : vector<2x96xf32>
    %117 = arith.divf %115, %116 : vector<2x96xf32>
    %118 = vector.extract_strided_slice %117 {offsets = [0, 0], sizes = [2, 32], strides = [1, 1]} : vector<2x96xf32> to vector<2x32xf32>
    %119 = vector.extract_strided_slice %117 {offsets = [0, 32], sizes = [2, 32], strides = [1, 1]} : vector<2x96xf32> to vector<2x32xf32>
    %120 = vector.extract_strided_slice %117 {offsets = [0, 64], sizes = [2, 32], strides = [1, 1]} : vector<2x96xf32> to vector<2x32xf32>
    %121 = vector.extract_strided_slice %111 {offsets = [0, 96], sizes = [2, 32], strides = [1, 1]} : vector<2x128xf32> to vector<2x32xf32>
    %122 = math.tanh %121 : vector<2x32xf32>
    %123 = arith.mulf %119, %101 : vector<2x32xf32>
    %124 = arith.mulf %118, %122 : vector<2x32xf32>
    %125 = arith.addf %123, %124 : vector<2x32xf32>
    %126 = math.tanh %125 : vector<2x32xf32>
    %127 = arith.mulf %120, %126 : vector<2x32xf32>
    %128 = arith.index_cast %107 : i32 to index
    %c0_52 = arith.constant 0 : index
    %129 = vector.load %arg9[%128, %c0_52] : memref<16x32xf32, #tpu.memory_space<vmem>>, vector<2x32xf32>
    tpu.vector_store %arg9[%128, %c0_52], %127 {strides = array<i32>} : memref<16x32xf32, #tpu.memory_space<vmem>>, vector<2x32xf32>,
    %c3_i32 = arith.constant 3 : i32
    %c2_i32_53 = arith.constant 2 : i32
    %130 = arith.muli %c3_i32, %c2_i32_53 : i32
    %131 = tpu.assume_multiple %130, 2 : i32
    %cst_54 = arith.constant dense<0.000000e+00> : vector<2x128xf32>
    %132 = tpu.matmul %127, %56, %cst_54 {dimension_numbers = #tpu.dot_dimension_numbers<[1], [0], [0], [1], [0, 0, 1, 1], [], []>} : vector<2x32xf32>, vector<32x128xf32>, vector<2x128xf32> -> vector<2x128xf32>
    %133 = arith.index_cast %131 : i32 to index
    %c0_55 = arith.constant 0 : index
    %134 = vector.load %arg8[%133, %c0_55] : memref<16x128xf32, #tpu.memory_space<vmem>>, vector<2x128xf32>
    %135 = arith.addf %132, %134 : vector<2x128xf32>
    %136 = vector.extract_strided_slice %135 {offsets = [0, 0], sizes = [2, 96], strides = [1, 1]} : vector<2x128xf32> to vector<2x96xf32>
    %137 = arith.negf %136 : vector<2x96xf32>
    %138 = math.exp %137 : vector<2x96xf32>
    %cst_56 = arith.constant 1.000000e+00 : f32
    %139 = vector.broadcast %cst_56 : f32 to vector<2x96xf32>
    %140 = arith.addf %139, %138 : vector<2x96xf32>
    %141 = arith.divf %139, %140 : vector<2x96xf32>
    %142 = vector.extract_strided_slice %141 {offsets = [0, 0], sizes = [2, 32], strides = [1, 1]} : vector<2x96xf32> to vector<2x32xf32>
    %143 = vector.extract_strided_slice %141 {offsets = [0, 32], sizes = [2, 32], strides = [1, 1]} : vector<2x96xf32> to vector<2x32xf32>
    %144 = vector.extract_strided_slice %141 {offsets = [0, 64], sizes = [2, 32], strides = [1, 1]} : vector<2x96xf32> to vector<2x32xf32>
    %145 = vector.extract_strided_slice %135 {offsets = [0, 96], sizes = [2, 32], strides = [1, 1]} : vector<2x128xf32> to vector<2x32xf32>
    %146 = math.tanh %145 : vector<2x32xf32>
    %147 = arith.mulf %143, %125 : vector<2x32xf32>
    %148 = arith.mulf %142, %146 : vector<2x32xf32>
    %149 = arith.addf %147, %148 : vector<2x32xf32>
    %150 = math.tanh %149 : vector<2x32xf32>
    %151 = arith.mulf %144, %150 : vector<2x32xf32>
    %152 = arith.index_cast %131 : i32 to index
    %c0_57 = arith.constant 0 : index
    %153 = vector.load %arg9[%152, %c0_57] : memref<16x32xf32, #tpu.memory_space<vmem>>, vector<2x32xf32>
    tpu.vector_store %arg9[%152, %c0_57], %151 {strides = array<i32>} : memref<16x32xf32, #tpu.memory_space<vmem>>, vector<2x32xf32>,
    %c4_i32 = arith.constant 4 : i32
    %c2_i32_58 = arith.constant 2 : i32
    %154 = arith.muli %c4_i32, %c2_i32_58 : i32
    %155 = tpu.assume_multiple %154, 2 : i32
    %cst_59 = arith.constant dense<0.000000e+00> : vector<2x128xf32>
    %156 = tpu.matmul %151, %56, %cst_59 {dimension_numbers = #tpu.dot_dimension_numbers<[1], [0], [0], [1], [0, 0, 1, 1], [], []>} : vector<2x32xf32>, vector<32x128xf32>, vector<2x128xf32> -> vector<2x128xf32>
    %157 = arith.index_cast %155 : i32 to index
    %c0_60 = arith.constant 0 : index
    %158 = vector.load %arg8[%157, %c0_60] : memref<16x128xf32, #tpu.memory_space<vmem>>, vector<2x128xf32>
    %159 = arith.addf %156, %158 : vector<2x128xf32>
    %160 = vector.extract_strided_slice %159 {offsets = [0, 0], sizes = [2, 96], strides = [1, 1]} : vector<2x128xf32> to vector<2x96xf32>
    %161 = arith.negf %160 : vector<2x96xf32>
    %162 = math.exp %161 : vector<2x96xf32>
    %cst_61 = arith.constant 1.000000e+00 : f32
    %163 = vector.broadcast %cst_61 : f32 to vector<2x96xf32>
    %164 = arith.addf %163, %162 : vector<2x96xf32>
    %165 = arith.divf %163, %164 : vector<2x96xf32>
    %166 = vector.extract_strided_slice %165 {offsets = [0, 0], sizes = [2, 32], strides = [1, 1]} : vector<2x96xf32> to vector<2x32xf32>
    %167 = vector.extract_strided_slice %165 {offsets = [0, 32], sizes = [2, 32], strides = [1, 1]} : vector<2x96xf32> to vector<2x32xf32>
    %168 = vector.extract_strided_slice %165 {offsets = [0, 64], sizes = [2, 32], strides = [1, 1]} : vector<2x96xf32> to vector<2x32xf32>
    %169 = vector.extract_strided_slice %159 {offsets = [0, 96], sizes = [2, 32], strides = [1, 1]} : vector<2x128xf32> to vector<2x32xf32>
    %170 = math.tanh %169 : vector<2x32xf32>
    %171 = arith.mulf %167, %149 : vector<2x32xf32>
    %172 = arith.mulf %166, %170 : vector<2x32xf32>
    %173 = arith.addf %171, %172 : vector<2x32xf32>
    %174 = math.tanh %173 : vector<2x32xf32>
    %175 = arith.mulf %168, %174 : vector<2x32xf32>
    %176 = arith.index_cast %155 : i32 to index
    %c0_62 = arith.constant 0 : index
    %177 = vector.load %arg9[%176, %c0_62] : memref<16x32xf32, #tpu.memory_space<vmem>>, vector<2x32xf32>
    tpu.vector_store %arg9[%176, %c0_62], %175 {strides = array<i32>} : memref<16x32xf32, #tpu.memory_space<vmem>>, vector<2x32xf32>,
    %c5_i32 = arith.constant 5 : i32
    %c2_i32_63 = arith.constant 2 : i32
    %178 = arith.muli %c5_i32, %c2_i32_63 : i32
    %179 = tpu.assume_multiple %178, 2 : i32
    %cst_64 = arith.constant dense<0.000000e+00> : vector<2x128xf32>
    %180 = tpu.matmul %175, %56, %cst_64 {dimension_numbers = #tpu.dot_dimension_numbers<[1], [0], [0], [1], [0, 0, 1, 1], [], []>} : vector<2x32xf32>, vector<32x128xf32>, vector<2x128xf32> -> vector<2x128xf32>
    %181 = arith.index_cast %179 : i32 to index
    %c0_65 = arith.constant 0 : index
    %182 = vector.load %arg8[%181, %c0_65] : memref<16x128xf32, #tpu.memory_space<vmem>>, vector<2x128xf32>
    %183 = arith.addf %180, %182 : vector<2x128xf32>
    %184 = vector.extract_strided_slice %183 {offsets = [0, 0], sizes = [2, 96], strides = [1, 1]} : vector<2x128xf32> to vector<2x96xf32>
    %185 = arith.negf %184 : vector<2x96xf32>
    %186 = math.exp %185 : vector<2x96xf32>
    %cst_66 = arith.constant 1.000000e+00 : f32
    %187 = vector.broadcast %cst_66 : f32 to vector<2x96xf32>
    %188 = arith.addf %187, %186 : vector<2x96xf32>
    %189 = arith.divf %187, %188 : vector<2x96xf32>
    %190 = vector.extract_strided_slice %189 {offsets = [0, 0], sizes = [2, 32], strides = [1, 1]} : vector<2x96xf32> to vector<2x32xf32>
    %191 = vector.extract_strided_slice %189 {offsets = [0, 32], sizes = [2, 32], strides = [1, 1]} : vector<2x96xf32> to vector<2x32xf32>
    %192 = vector.extract_strided_slice %189 {offsets = [0, 64], sizes = [2, 32], strides = [1, 1]} : vector<2x96xf32> to vector<2x32xf32>
    %193 = vector.extract_strided_slice %183 {offsets = [0, 96], sizes = [2, 32], strides = [1, 1]} : vector<2x128xf32> to vector<2x32xf32>
    %194 = math.tanh %193 : vector<2x32xf32>
    %195 = arith.mulf %191, %173 : vector<2x32xf32>
    %196 = arith.mulf %190, %194 : vector<2x32xf32>
    %197 = arith.addf %195, %196 : vector<2x32xf32>
    %198 = math.tanh %197 : vector<2x32xf32>
    %199 = arith.mulf %192, %198 : vector<2x32xf32>
    %200 = arith.index_cast %179 : i32 to index
    %c0_67 = arith.constant 0 : index
    %201 = vector.load %arg9[%200, %c0_67] : memref<16x32xf32, #tpu.memory_space<vmem>>, vector<2x32xf32>
    tpu.vector_store %arg9[%200, %c0_67], %199 {strides = array<i32>} : memref<16x32xf32, #tpu.memory_space<vmem>>, vector<2x32xf32>,
    %c6_i32 = arith.constant 6 : i32
    %c2_i32_68 = arith.constant 2 : i32
    %202 = arith.muli %c6_i32, %c2_i32_68 : i32
    %203 = tpu.assume_multiple %202, 2 : i32
    %cst_69 = arith.constant dense<0.000000e+00> : vector<2x128xf32>
    %204 = tpu.matmul %199, %56, %cst_69 {dimension_numbers = #tpu.dot_dimension_numbers<[1], [0], [0], [1], [0, 0, 1, 1], [], []>} : vector<2x32xf32>, vector<32x128xf32>, vector<2x128xf32> -> vector<2x128xf32>
    %205 = arith.index_cast %203 : i32 to index
    %c0_70 = arith.constant 0 : index
    %206 = vector.load %arg8[%205, %c0_70] : memref<16x128xf32, #tpu.memory_space<vmem>>, vector<2x128xf32>
    %207 = arith.addf %204, %206 : vector<2x128xf32>
    %208 = vector.extract_strided_slice %207 {offsets = [0, 0], sizes = [2, 96], strides = [1, 1]} : vector<2x128xf32> to vector<2x96xf32>
    %209 = arith.negf %208 : vector<2x96xf32>
    %210 = math.exp %209 : vector<2x96xf32>
    %cst_71 = arith.constant 1.000000e+00 : f32
    %211 = vector.broadcast %cst_71 : f32 to vector<2x96xf32>
    %212 = arith.addf %211, %210 : vector<2x96xf32>
    %213 = arith.divf %211, %212 : vector<2x96xf32>
    %214 = vector.extract_strided_slice %213 {offsets = [0, 0], sizes = [2, 32], strides = [1, 1]} : vector<2x96xf32> to vector<2x32xf32>
    %215 = vector.extract_strided_slice %213 {offsets = [0, 32], sizes = [2, 32], strides = [1, 1]} : vector<2x96xf32> to vector<2x32xf32>
    %216 = vector.extract_strided_slice %213 {offsets = [0, 64], sizes = [2, 32], strides = [1, 1]} : vector<2x96xf32> to vector<2x32xf32>
    %217 = vector.extract_strided_slice %207 {offsets = [0, 96], sizes = [2, 32], strides = [1, 1]} : vector<2x128xf32> to vector<2x32xf32>
    %218 = math.tanh %217 : vector<2x32xf32>
    %219 = arith.mulf %215, %197 : vector<2x32xf32>
    %220 = arith.mulf %214, %218 : vector<2x32xf32>
    %221 = arith.addf %219, %220 : vector<2x32xf32>
    %222 = math.tanh %221 : vector<2x32xf32>
    %223 = arith.mulf %216, %222 : vector<2x32xf32>
    %224 = arith.index_cast %203 : i32 to index
    %c0_72 = arith.constant 0 : index
    %225 = vector.load %arg9[%224, %c0_72] : memref<16x32xf32, #tpu.memory_space<vmem>>, vector<2x32xf32>
    tpu.vector_store %arg9[%224, %c0_72], %223 {strides = array<i32>} : memref<16x32xf32, #tpu.memory_space<vmem>>, vector<2x32xf32>,
    %c7_i32 = arith.constant 7 : i32
    %c2_i32_73 = arith.constant 2 : i32
    %226 = arith.muli %c7_i32, %c2_i32_73 : i32
    %227 = tpu.assume_multiple %226, 2 : i32
    %cst_74 = arith.constant dense<0.000000e+00> : vector<2x128xf32>
    %228 = tpu.matmul %223, %56, %cst_74 {dimension_numbers = #tpu.dot_dimension_numbers<[1], [0], [0], [1], [0, 0, 1, 1], [], []>} : vector<2x32xf32>, vector<32x128xf32>, vector<2x128xf32> -> vector<2x128xf32>
    %229 = arith.index_cast %227 : i32 to index
    %c0_75 = arith.constant 0 : index
    %230 = vector.load %arg8[%229, %c0_75] : memref<16x128xf32, #tpu.memory_space<vmem>>, vector<2x128xf32>
    %231 = arith.addf %228, %230 : vector<2x128xf32>
    %232 = vector.extract_strided_slice %231 {offsets = [0, 0], sizes = [2, 96], strides = [1, 1]} : vector<2x128xf32> to vector<2x96xf32>
    %233 = arith.negf %232 : vector<2x96xf32>
    %234 = math.exp %233 : vector<2x96xf32>
    %cst_76 = arith.constant 1.000000e+00 : f32
    %235 = vector.broadcast %cst_76 : f32 to vector<2x96xf32>
    %236 = arith.addf %235, %234 : vector<2x96xf32>
    %237 = arith.divf %235, %236 : vector<2x96xf32>
    %238 = vector.extract_strided_slice %237 {offsets = [0, 0], sizes = [2, 32], strides = [1, 1]} : vector<2x96xf32> to vector<2x32xf32>
    %239 = vector.extract_strided_slice %237 {offsets = [0, 32], sizes = [2, 32], strides = [1, 1]} : vector<2x96xf32> to vector<2x32xf32>
    %240 = vector.extract_strided_slice %237 {offsets = [0, 64], sizes = [2, 32], strides = [1, 1]} : vector<2x96xf32> to vector<2x32xf32>
    %241 = vector.extract_strided_slice %231 {offsets = [0, 96], sizes = [2, 32], strides = [1, 1]} : vector<2x128xf32> to vector<2x32xf32>
    %242 = math.tanh %241 : vector<2x32xf32>
    %243 = arith.mulf %239, %221 : vector<2x32xf32>
    %244 = arith.mulf %238, %242 : vector<2x32xf32>
    %245 = arith.addf %243, %244 : vector<2x32xf32>
    %246 = math.tanh %245 : vector<2x32xf32>
    %247 = arith.mulf %240, %246 : vector<2x32xf32>
    %248 = arith.index_cast %227 : i32 to index
    %c0_77 = arith.constant 0 : index
    %249 = vector.load %arg9[%248, %c0_77] : memref<16x32xf32, #tpu.memory_space<vmem>>, vector<2x32xf32>
    tpu.vector_store %arg9[%248, %c0_77], %247 {strides = array<i32>} : memref<16x32xf32, #tpu.memory_space<vmem>>, vector<2x32xf32>,
    %c8_i32 = arith.constant 8 : i32
    %250 = vector.extract_strided_slice %247 {offsets = [0, 0], sizes = [2, 16], strides = [1, 1]} : vector<2x32xf32> to vector<2x16xf32>
    %c0_78 = arith.constant 0 : index
    %c0_79 = arith.constant 0 : index
    %c0_80 = arith.constant 0 : index
    %251 = vector.load %arg5[%c0_78, %c0_79, %c0_80] : memref<2x2x16xf32, #tpu.memory_space<vmem>>, vector<1x2x16xf32>
    %252 = vector.shape_cast %251 : vector<1x2x16xf32> to vector<2x16xf32>
    %253 = vector.shape_cast %250 : vector<2x16xf32> to vector<1x2x16xf32>
    tpu.vector_store %arg5[%c0_78, %c0_79, %c0_80], %253 {strides = array<i32>} : memref<2x2x16xf32, #tpu.memory_space<vmem>>, vector<1x2x16xf32>,
    %254 = vector.extract_strided_slice %247 {offsets = [0, 16], sizes = [2, 16], strides = [1, 1]} : vector<2x32xf32> to vector<2x16xf32>
    %c1 = arith.constant 1 : index
    %c0_81 = arith.constant 0 : index
    %c0_82 = arith.constant 0 : index
    %255 = vector.load %arg5[%c1, %c0_81, %c0_82] : memref<2x2x16xf32, #tpu.memory_space<vmem>>, vector<1x2x16xf32>
    %256 = vector.shape_cast %255 : vector<1x2x16xf32> to vector<2x16xf32>
    %257 = vector.shape_cast %254 : vector<2x16xf32> to vector<1x2x16xf32>
    tpu.vector_store %arg5[%c1, %c0_81, %c0_82], %257 {strides = array<i32>} : memref<2x2x16xf32, #tpu.memory_space<vmem>>, vector<1x2x16xf32>,
    %258 = vector.extract_strided_slice %245 {offsets = [0, 0], sizes = [2, 16], strides = [1, 1]} : vector<2x32xf32> to vector<2x16xf32>
    %c0_83 = arith.constant 0 : index
    %c0_84 = arith.constant 0 : index
    %c0_85 = arith.constant 0 : index
    %259 = vector.load %arg6[%c0_83, %c0_84, %c0_85] : memref<2x2x16xf32, #tpu.memory_space<vmem>>, vector<1x2x16xf32>
    %260 = vector.shape_cast %259 : vector<1x2x16xf32> to vector<2x16xf32>
    %261 = vector.shape_cast %258 : vector<2x16xf32> to vector<1x2x16xf32>
    tpu.vector_store %arg6[%c0_83, %c0_84, %c0_85], %261 {strides = array<i32>} : memref<2x2x16xf32, #tpu.memory_space<vmem>>, vector<1x2x16xf32>,
    %262 = vector.extract_strided_slice %245 {offsets = [0, 16], sizes = [2, 16], strides = [1, 1]} : vector<2x32xf32> to vector<2x16xf32>
    %c1_86 = arith.constant 1 : index
    %c0_87 = arith.constant 0 : index
    %c0_88 = arith.constant 0 : index
    %263 = vector.load %arg6[%c1_86, %c0_87, %c0_88] : memref<2x2x16xf32, #tpu.memory_space<vmem>>, vector<1x2x16xf32>
    %264 = vector.shape_cast %263 : vector<1x2x16xf32> to vector<2x16xf32>
    %265 = vector.shape_cast %262 : vector<2x16xf32> to vector<1x2x16xf32>
    tpu.vector_store %arg6[%c1_86, %c0_87, %c0_88], %265 {strides = array<i32>} : memref<2x2x16xf32, #tpu.memory_space<vmem>>, vector<1x2x16xf32>,
    %c0_89 = arith.constant 0 : index
    %c0_90 = arith.constant 0 : index
    %266 = vector.load %arg9[%c0_89, %c0_90] : memref<16x32xf32, #tpu.memory_space<vmem>>, vector<16x32xf32>
    %267 = vector.extract_strided_slice %266 {offsets = [0, 0], sizes = [2, 16], strides = [1, 1]} : vector<16x32xf32> to vector<2x16xf32>
    %268 = vector.extract_strided_slice %266 {offsets = [14, 16], sizes = [2, 16], strides = [1, 1]} : vector<16x32xf32> to vector<2x16xf32>
    %269 = vector.extract_strided_slice %266 {offsets = [2, 0], sizes = [2, 16], strides = [1, 1]} : vector<16x32xf32> to vector<2x16xf32>
    %270 = vector.extract_strided_slice %266 {offsets = [12, 16], sizes = [2, 16], strides = [1, 1]} : vector<16x32xf32> to vector<2x16xf32>
    %271 = vector.extract_strided_slice %266 {offsets = [4, 0], sizes = [2, 16], strides = [1, 1]} : vector<16x32xf32> to vector<2x16xf32>
    %272 = vector.extract_strided_slice %266 {offsets = [10, 16], sizes = [2, 16], strides = [1, 1]} : vector<16x32xf32> to vector<2x16xf32>
    %273 = vector.extract_strided_slice %266 {offsets = [6, 0], sizes = [2, 16], strides = [1, 1]} : vector<16x32xf32> to vector<2x16xf32>
    %274 = vector.extract_strided_slice %266 {offsets = [8, 16], sizes = [2, 16], strides = [1, 1]} : vector<16x32xf32> to vector<2x16xf32>
    %275 = vector.extract_strided_slice %266 {offsets = [8, 0], sizes = [2, 16], strides = [1, 1]} : vector<16x32xf32> to vector<2x16xf32>
    %276 = vector.extract_strided_slice %266 {offsets = [6, 16], sizes = [2, 16], strides = [1, 1]} : vector<16x32xf32> to vector<2x16xf32>
    %277 = vector.extract_strided_slice %266 {offsets = [10, 0], sizes = [2, 16], strides = [1, 1]} : vector<16x32xf32> to vector<2x16xf32>
    %278 = vector.extract_strided_slice %266 {offsets = [4, 16], sizes = [2, 16], strides = [1, 1]} : vector<16x32xf32> to vector<2x16xf32>
    %279 = vector.extract_strided_slice %266 {offsets = [12, 0], sizes = [2, 16], strides = [1, 1]} : vector<16x32xf32> to vector<2x16xf32>
    %280 = vector.extract_strided_slice %266 {offsets = [2, 16], sizes = [2, 16], strides = [1, 1]} : vector<16x32xf32> to vector<2x16xf32>
    %281 = vector.extract_strided_slice %266 {offsets = [14, 0], sizes = [2, 16], strides = [1, 1]} : vector<16x32xf32> to vector<2x16xf32>
    %282 = vector.extract_strided_slice %266 {offsets = [0, 16], sizes = [2, 16], strides = [1, 1]} : vector<16x32xf32> to vector<2x16xf32>
    %283 = tpu.concatenate %267, %268, %269, %270, %271, %272, %273, %274, %275, %276, %277, %278, %279, %280, %281, %282 in 1 : vector<2x16xf32>, vector<2x16xf32>, vector<2x16xf32>, vector<2x16xf32>, vector<2x16xf32>, vector<2x16xf32>, vector<2x16xf32>, vector<2x16xf32>, vector<2x16xf32>, vector<2x16xf32>, vector<2x16xf32>, vector<2x16xf32>, vector<2x16xf32>, vector<2x16xf32>, vector<2x16xf32>, vector<2x16xf32> -> vector<2x256xf32>
    %c0_91 = arith.constant 0 : index
    %c0_92 = arith.constant 0 : index
    %284 = vector.load %arg4[%c0_91, %c0_92] : memref<2x256xf32, #tpu.memory_space<vmem>>, vector<2x256xf32>
    tpu.vector_store %arg4[%c0_91, %c0_92], %283 {strides = array<i32>} : memref<2x256xf32, #tpu.memory_space<vmem>>, vector<2x256xf32>,
    return
  }
}

</mosaic_0001>

<llo_original>
// kernel: tpu_custom_call.1
$region0: #{tpu_custom_call.1}
  #allocation0 [shape = 'u32[]', space=smem, size = 0x4, offset = 0x4, fixed_abs, tag = 'smem constant byte address 0x4 - core index']
  #allocation1 [shape = 'u32[144,128]{1,0:T(1,128)}', space=vmem, size = 0x12000, scoped, tag = 'internal scratch']
  #allocation2 [shape = 'f32[16,8]{1,0:T(8,128)}', space=vmem, size = 0x2000, scoped, tag = 'scratch operand']
  #allocation3 [shape = 'f32[16,128]{1,0:T(8,128)}', space=vmem, size = 0x2000, scoped, tag = 'scratch operand']
  #allocation4 [shape = 'f32[16,32]{1,0:T(8,128)}', space=vmem, size = 0x2000, scoped, tag = 'scratch operand']
  %s0 = inlined_call_operand.vmem [shape: f32[2,8,4], index: 0, kind: input, shape index: {}]
  %s1 = inlined_call_operand.vmem [shape: f32[8,128], index: 1, kind: input, shape index: {}]
  %s2 = inlined_call_operand.hbm [shape: f32[32,128], index: 2, kind: input, shape index: {}]
  %s3 = inlined_call_operand.vmem [shape: f32[1,128], index: 3, kind: input, shape index: {}]
  %s4 = inlined_call_operand.hbm [shape: f32[2,256], index: 4, kind: output, shape index: {0}]
  %s5 = inlined_call_operand.hbm [shape: f32[2,2,16], index: 5, kind: output, shape index: {1}]
  %s6 = inlined_call_operand.hbm [shape: f32[2,2,16], index: 6, kind: output, shape index: {2}]
  %7 = xla_tuple %s4, %s5, %s6
  %s8 = sld [smem:[#allocation0]]
  $region46: #{tpu_custom_call.1} parent=0
    _
  %s10 = ssub.s32 1, %s8
  %s11 = scalar_select 0, %s10, %s8
  $region1: #{tpu_custom_call.1} parent=0
    #allocation5 [shape = 'u8[16384]{0}', space=vmem, size = 0x4000, scoped, tag = 'input window, operand 2, single buffered']
    #allocation6 [shape = 's32[1]{0}', space=sflag, size = 0x4, scoped, tag = 'scoped memory for tpu_custom_call.1']
    #allocation7 [shape = 's32[1]{0}', space=sflag, size = 0x4, scoped, tag = 'scoped memory for tpu_custom_call.1']
    #allocation8 [shape = 'u8[2048]{0}', space=vmem, size = 0x800, scoped, tag = 'output window, operand 0, single buffered']
    #allocation9 [shape = 'u8[2048]{0}', space=vmem, size = 0x800, scoped, tag = 'output window, operand 1, single buffered']
    #allocation10 [shape = 's32[1]{0}', space=sflag, size = 0x4, scoped, tag = 'scoped memory for tpu_custom_call.1']
    #allocation11 [shape = 'u8[2048]{0}', space=vmem, size = 0x800, scoped, tag = 'output window, operand 2, single buffered']
    %12 = vsyncpa [#allocation6], 0
    %13 = vsyncpa [#allocation7], 0
    %14 = vsyncpa [#allocation10], 0
    // Predicated region
    $region2: #{tpu_custom_call.1} parent=1 // pred_check
      _
    $region3: #{tpu_custom_call.1} parent=1 // pred_check_branch
      %16 = sbr.rel (0) target = $region5
    $region4: #{tpu_custom_call.1} parent=1 // pred_region
      _
    $region5: #{tpu_custom_call.1} parent=1 // pred_fallthru
      _
    // Predicated region
    $region6: #{tpu_custom_call.1} parent=1 // pred_check
      _
    $region7: #{tpu_custom_call.1} parent=1 // pred_check_branch
      %18 = sbr.rel (0) target = $region9
    $region8: #{tpu_custom_call.1} parent=1 // pred_region
      _
    $region9: #{tpu_custom_call.1} parent=1 // pred_fallthru
      _
    // Predicated region
    $region10: #{tpu_custom_call.1} parent=1 // pred_check
      _
    $region11: #{tpu_custom_call.1} parent=1 // pred_check_branch
      %20 = sbr.rel (0) target = $region13
    $region12: #{tpu_custom_call.1} parent=1 // pred_region
      %s22 = ssub.s32 512, 512
      %23 = vsyncadd [#allocation6], %s22
      %s24 = sshll.u32 [#allocation5], 4
      %s25 = int_to_ptr.vmem [resolvable:$true] %s24
      %30 = dma.hbm_to_vmem [thread:$0]  %s2, 512, %s25, [#allocation6], 128, 128, 8
    $region13: #{tpu_custom_call.1} parent=1 // pred_fallthru
      _
    // Predicated region
    $region14: #{tpu_custom_call.1} parent=1 // pred_check
      _
    $region15: #{tpu_custom_call.1} parent=1 // pred_check_branch
      %32 = sbr.rel (0) target = $region17
    $region16: #{tpu_custom_call.1} parent=1 // pred_region
      _
    $region17: #{tpu_custom_call.1} parent=1 // pred_fallthru
      _
    // Predicated region
    $region18: #{tpu_custom_call.1} parent=1 // pred_check
      _
    $region19: #{tpu_custom_call.1} parent=1 // pred_check_branch
      %34 = sbr.rel (0) target = $region21
    $region20: #{tpu_custom_call.1} parent=1 // pred_region
      %35 = dma.done [#allocation6], 512
    $region21: #{tpu_custom_call.1} parent=1 // pred_fallthru
      _
    %v36 = vld [vmem:[%s0] sm:$0xff]
    %v37 = vld [vmem:[%s0 + $0x8] sm:$0xff]
    %v40 = vrot.slane %v37, 7
    %vm41 = vcmask 1041409
    %v42 = vsel %vm41, %v40, %v36
    %vm44 = vcmask 25600
    %45 = vst.msk [vmem:[#allocation2] sm:$0x3] %vm44, %v42
    %46 = vrot.lane.b32.xlu0 %v36, 4
    %v47 = vpop.permute.xlu0 %46
    %48 = vrot.lane.b32.xlu0 %v40, 4
    %v49 = vpop.permute.xlu0 %48
    %vm52 = vcmask 64551
    %53 = vst.msk [vmem:[#allocation2 - $0x7] sm:$0x80] %vm52, %v47
    %vm54 = vcmask 57376
    %55 = vst.msk [vmem:[#allocation2 + $0x1] sm:$0x1] %vm54, %v49
    %vm56 = vcmask 1042434
    %v57 = vsel %vm56, %v40, %v36
    %vm59 = vcmask 26625
    %60 = vst.msk [vmem:[#allocation2 + $0x1] sm:$0x6] %vm59, %v57
    %vm61 = vcmask 1047559
    %v62 = vsel %vm61, %v40, %v36
    %63 = vrot.lane.b32.xlu0 %v62, 4
    %v64 = vpop.permute.xlu0 %63
    %vm66 = vcmask 64550
    %67 = vst.msk [vmem:[#allocation2 - $0x4] sm:$0xc0] %vm66, %v64
    %vm68 = vcmask 1043459
    %v69 = vsel %vm68, %v40, %v36
    %vm71 = vcmask 27650
    %72 = vst.msk [vmem:[#allocation2 + $0x2] sm:$0xc] %vm71, %v69
    %vm73 = vcmask 1046534
    %v74 = vsel %vm73, %v40, %v36
    %75 = vrot.lane.b32.xlu0 %v74, 4
    %v76 = vpop.permute.xlu0 %75
    %vm78 = vcmask 63525
    %79 = vst.msk [vmem:[#allocation2 - $0x1] sm:$0x60] %vm78, %v76
    %vm80 = vcmask 1044484
    %v81 = vsel %vm80, %v40, %v36
    %vm83 = vcmask 28675
    %84 = vst.msk [vmem:[#allocation2 + $0x3] sm:$0x18] %vm83, %v81
    %vm85 = vcmask 1045509
    %v86 = vsel %vm85, %v40, %v36
    %87 = vrot.lane.b32.xlu0 %v86, 4
    %v88 = vpop.permute.xlu0 %87
    %vm90 = vcmask 62500
    %91 = vst.msk [vmem:[#allocation2 + $0x2] sm:$0x30] %vm90, %v88
    %vm93 = vcmask 29700
    %94 = vst.msk [vmem:[#allocation2 + $0x4] sm:$0x30] %vm93, %v86
    %95 = vrot.lane.b32.xlu0 %v81, 4
    %v96 = vpop.permute.xlu0 %95
    %vm98 = vcmask 61475
    %99 = vst.msk [vmem:[#allocation2 + $0x5] sm:$0x18] %vm98, %v96
    %vm101 = vcmask 30725
    %102 = vst.msk [vmem:[#allocation2 + $0x5] sm:$0x60] %vm101, %v74
    %103 = vrot.lane.b32.xlu0 %v69, 4
    %v104 = vpop.permute.xlu0 %103
    %vm106 = vcmask 60450
    %107 = vst.msk [vmem:[#allocation2 + $0x8] sm:$0xc] %vm106, %v104
    %vm109 = vcmask 31750
    %110 = vst.msk [vmem:[#allocation2 + $0x6] sm:$0xc0] %vm109, %v62
    %111 = vrot.lane.b32.xlu0 %v57, 4
    %v112 = vpop.permute.xlu0 %111
    %vm114 = vcmask 59425
    %115 = vst.msk [vmem:[#allocation2 + $0xb] sm:$0x6] %vm114, %v112
    %vm118 = vcmask 31751
    %119 = vst.msk [vmem:[#allocation2 + $0x7] sm:$0x80] %vm118, %v36
    %vm120 = vcmask 24576
    %121 = vst.msk [vmem:[#allocation2 + $0xf] sm:$0x1] %vm120, %v40
    %122 = vrot.lane.b32.xlu0 %v42, 4
    %v123 = vpop.permute.xlu0 %122
    %vm125 = vcmask 58400
    %126 = vst.msk [vmem:[#allocation2 + $0xe] sm:$0x3] %vm125, %v123
    %v127 = vld [vmem:[#allocation2] sm:$0xff]
    %v128 = vld [vmem:[#allocation2 + $0x8] sm:$0xff]
    %v129 = vld [vmem:[%s1] sm:$0xff]
    %v130 = vld [vmem:[%s3] sm:$0x1]
    %v132 = vlaneseq
    %v133 = vshrl.u32 %v132, 7
    %v134 = vsub.s32 0, %v133
    %v135 = vrot.slane %v130, %v134
    %vm137 = vcmask 64512
    %v139 = vsel %vm137, %v127, 0
    %v142 = vsel %vm137, %v128, 0
    %144 = vmatprep.subr.mxu0 0.0
    %145 = vmatpush1.msra.mxu0 0.0
    %146 = vmatprep.subr.mxu0 0.0
    %147 = vmatpush1.msra.mxu0 0.0
    %148 = vmatprep.subr.mxu0 0.0
    %149 = vmatpush1.msra.mxu0 0.0
    %150 = vmatprep.subr.mxu0 0.0
    %151 = vmatpush1.msra.mxu0 0.0
    %152 = vmatprep.subr.mxu0 0.0
    %153 = vmatpush1.msra.mxu0 0.0
    %154 = vmatprep.subr.mxu0 0.0
    %155 = vmatpush1.msra.mxu0 0.0
    %156 = vmatprep.subr.mxu0 0.0
    %157 = vmatpush1.msra.mxu0 0.0
    %158 = vmatprep.subr.mxu0 0.0
    %159 = vmatpush1.msra.mxu0 0.0
    %160 = vmatprep.subr.mxu0 0.0
    %161 = vmatpush1.msra.mxu0 0.0
    %162 = vmatprep.subr.mxu0 0.0
    %163 = vmatpush1.msra.mxu0 0.0
    %164 = vmatprep.subr.mxu0 0.0
    %165 = vmatpush1.msra.mxu0 0.0
    %166 = vmatprep.subr.mxu0 0.0
    %167 = vmatpush1.msra.mxu0 0.0
    %168 = vmatprep.subr.mxu0 0.0
    %169 = vmatpush1.msra.mxu0 0.0
    %170 = vmatprep.subr.mxu0 0.0
    %171 = vmatpush1.msra.mxu0 0.0
    %172 = vmatprep.subr.mxu0 0.0
    %173 = vmatpush1.msra.mxu0 0.0
    %174 = vmatprep.subr.mxu0 0.0
    %175 = vmatpush1.msra.mxu0 %v129
    %176 = vmatprep.subr.mxu0 0.0
    %177 = vmatpush2.msra.mxu0 0.0
    %178 = vmatprep.subr.mxu0 0.0
    %179 = vmatpush2.msra.mxu0 0.0
    %180 = vmatprep.subr.mxu0 0.0
    %181 = vmatpush2.msra.mxu0 0.0
    %182 = vmatprep.subr.mxu0 0.0
    %183 = vmatpush2.msra.mxu0 0.0
    %184 = vmatprep.subr.mxu0 0.0
    %185 = vmatpush2.msra.mxu0 0.0
    %186 = vmatprep.subr.mxu0 0.0
    %187 = vmatpush2.msra.mxu0 0.0
    %188 = vmatprep.subr.mxu0 0.0
    %189 = vmatpush2.msra.mxu0 0.0
    %190 = vmatprep.subr.mxu0 0.0
    %191 = vmatpush2.msra.mxu0 0.0
    %192 = vmatprep.subr.mxu0 0.0
    %193 = vmatpush2.msra.mxu0 0.0
    %194 = vmatprep.subr.mxu0 0.0
    %195 = vmatpush2.msra.mxu0 0.0
    %196 = vmatprep.subr.mxu0 0.0
    %197 = vmatpush2.msra.mxu0 0.0
    %198 = vmatprep.subr.mxu0 0.0
    %199 = vmatpush2.msra.mxu0 0.0
    %200 = vmatprep.subr.mxu0 0.0
    %201 = vmatpush2.msra.mxu0 0.0
    %202 = vmatprep.subr.mxu0 0.0
    %203 = vmatpush2.msra.mxu0 0.0
    %204 = vmatprep.subr.mxu0 0.0
    %205 = vmatpush2.msra.mxu0 0.0
    %206 = vmatprep.subr.mxu0 0.0
    %207 = vmatpush2.msra.mxu0 0.0
    %208 = vmatprep.mubr.f32.mxu0 0.0
    %209 = vmatmul.mubr.f32.gmra.mxu0 %v139
    %v210 = vpop.f32.mrf.mxu0
    %v211 = vadd.f32 %v135, %v210
    %v212 = vpop.f32.mrf.mxu0
    %213 = vmatprep.mubr.f32.mxu0 0.0
    %214 = vmatmul.mubr.f32.gmra.mxu0 %v142
    %v215 = vpop.f32.mrf.mxu0
    %v216 = vadd.f32 %v135, %v215
    %v217 = vpop.f32.mrf.mxu0
    %218 = vdwg.mxu0
    %219 = vst [vmem:[#allocation3] sm:$0xff] %v211
    %220 = vst [vmem:[#allocation3 + $0x8] sm:$0xff] %v216
    %v221 = vld [vmem:[#allocation5] sm:$0xff]
    %v222 = vld [vmem:[#allocation5 + $0x8] sm:$0xff]
    %v223 = vld [vmem:[#allocation5 + $0x10] sm:$0xff]
    %v224 = vld [vmem:[#allocation5 + $0x18] sm:$0xff]
    %v225 = vld [vmem:[#allocation3] sm:$0x3]
    %vm226 = vcmask 261120
    %v228 = vsel %vm226, 0.0, 0
    %230 = vmatprep.subr.mxu0 0.0
    %231 = vmatpush1.msra.mxu0 0.0
    %232 = vmatprep.subr.mxu0 0.0
    %233 = vmatpush1.msra.mxu0 0.0
    %234 = vmatprep.subr.mxu0 0.0
    %235 = vmatpush1.msra.mxu0 0.0
    %236 = vmatprep.subr.mxu0 0.0
    %237 = vmatpush1.msra.mxu0 0.0
    %238 = vmatprep.subr.mxu0 0.0
    %239 = vmatpush1.msra.mxu0 0.0
    %240 = vmatprep.subr.mxu0 0.0
    %241 = vmatpush1.msra.mxu0 0.0
    %242 = vmatprep.subr.mxu0 0.0
    %243 = vmatpush1.msra.mxu0 0.0
    %244 = vmatprep.subr.mxu0 0.0
    %245 = vmatpush1.msra.mxu0 0.0
    %246 = vmatprep.subr.mxu0 0.0
    %247 = vmatpush1.msra.mxu0 0.0
    %248 = vmatprep.subr.mxu0 0.0
    %249 = vmatpush1.msra.mxu0 0.0
    %250 = vmatprep.subr.mxu0 0.0
    %251 = vmatpush1.msra.mxu0 0.0
    %252 = vmatprep.subr.mxu0 0.0
    %253 = vmatpush1.msra.mxu0 0.0
    %254 = vmatprep.subr.mxu0 0.0
    %255 = vmatpush1.msra.mxu0 %v224
    %256 = vmatprep.subr.mxu0 0.0
    %257 = vmatpush1.msra.mxu0 %v223
    %258 = vmatprep.subr.mxu0 0.0
    %259 = vmatpush1.msra.mxu0 %v222
    %260 = vmatprep.subr.mxu0 0.0
    %261 = vmatpush1.msra.mxu0 %v221
    %262 = vmatprep.subr.mxu0 0.0
    %263 = vmatpush2.msra.mxu0 0.0
    %264 = vmatprep.subr.mxu0 0.0
    %265 = vmatpush2.msra.mxu0 0.0
    %266 = vmatprep.subr.mxu0 0.0
    %267 = vmatpush2.msra.mxu0 0.0
    %268 = vmatprep.subr.mxu0 0.0
    %269 = vmatpush2.msra.mxu0 0.0
    %270 = vmatprep.subr.mxu0 0.0
    %271 = vmatpush2.msra.mxu0 0.0
    %272 = vmatprep.subr.mxu0 0.0
    %273 = vmatpush2.msra.mxu0 0.0
    %274 = vmatprep.subr.mxu0 0.0
    %275 = vmatpush2.msra.mxu0 0.0
    %276 = vmatprep.subr.mxu0 0.0
    %277 = vmatpush2.msra.mxu0 0.0
    %278 = vmatprep.subr.mxu0 0.0
    %279 = vmatpush2.msra.mxu0 0.0
    %280 = vmatprep.subr.mxu0 0.0
    %281 = vmatpush2.msra.mxu0 0.0
    %282 = vmatprep.subr.mxu0 0.0
    %283 = vmatpush2.msra.mxu0 0.0
    %284 = vmatprep.subr.mxu0 0.0
    %285 = vmatpush2.msra.mxu0 0.0
    %286 = vmatprep.subr.mxu0 0.0
    %287 = vmatpush2.msra.mxu0 0.0
    %288 = vmatprep.subr.mxu0 0.0
    %289 = vmatpush2.msra.mxu0 0.0
    %290 = vmatprep.subr.mxu0 0.0
    %291 = vmatpush2.msra.mxu0 0.0
    %292 = vmatprep.subr.mxu0 0.0
    %293 = vmatpush2.msra.mxu0 0.0
    %294 = vmatprep.mubr.f32.mxu0 0.0
    %295 = vmatmul.mubr.f32.gmra.mxu0 %v228
    %v296 = vpop.f32.mrf.mxu0
    %v297 = vadd.f32 %v225, %v296
    %v298 = vpop.f32.mrf.mxu0
    %299 = vdwg.mxu0
    %v300 = vxor.u32 %v297, 2147483648
    %v301 = vmul.f32 %v300, 1.442695
    %v302 = vpow.pop %v301
    %v303 = vadd.f32 %v302, 1.0
    %v304 = vrcp.pop %v303
    %v305 = vmul.f32 1.0, %v304
    %v306 = vtanh.pop %v297
    %v307 = vmul.f32 %v305, 0.0
    %309 = vrot.lane.b32.xlu0 %v306, 32
    %v310 = vpop.permute.xlu0 %309
    %v312 = vmul.f32 %v305, %v310
    %314 = vrot.lane.b32.xlu0 %v312, 32
    %v315 = vpop.permute.xlu0 %314
    %v317 = vadd.f32 %v307, %v315
    %v318 = vtanh.pop %v317
    %320 = vrot.lane.b32.xlu0 %v318, 32
    %v321 = vpop.permute.xlu0 %320
    %v323 = vmul.f32 %v305, %v321
    %325 = vrot.lane.b32.xlu0 %v323, 64
    %v326 = vpop.permute.xlu0 %325
    %vm328 = vcmask 254976
    %329 = vst.msk [vmem:[#allocation4] sm:$0x3] %vm328, %v326
    %s330 = scalar_lea.vmem [#allocation3], 2
    %v331 = vld [vmem:[%s330] sm:$0x3]
    %v332 = vsel %vm226, %v326, 0
    %334 = vmatprep.subr.mxu0 0.0
    %335 = vmatpush1.msra.mxu0 0.0
    %336 = vmatprep.subr.mxu0 0.0
    %337 = vmatpush1.msra.mxu0 0.0
    %338 = vmatprep.subr.mxu0 0.0
    %339 = vmatpush1.msra.mxu0 0.0
    %340 = vmatprep.subr.mxu0 0.0
    %341 = vmatpush1.msra.mxu0 0.0
    %342 = vmatprep.subr.mxu0 0.0
    %343 = vmatpush1.msra.mxu0 0.0
    %344 = vmatprep.subr.mxu0 0.0
    %345 = vmatpush1.msra.mxu0 0.0
    %346 = vmatprep.subr.mxu0 0.0
    %347 = vmatpush1.msra.mxu0 0.0
    %348 = vmatprep.subr.mxu0 0.0
    %349 = vmatpush1.msra.mxu0 0.0
    %350 = vmatprep.subr.mxu0 0.0
    %351 = vmatpush1.msra.mxu0 0.0
    %352 = vmatprep.subr.mxu0 0.0
    %353 = vmatpush1.msra.mxu0 0.0
    %354 = vmatprep.subr.mxu0 0.0
    %355 = vmatpush1.msra.mxu0 0.0
    %356 = vmatprep.subr.mxu0 0.0
    %357 = vmatpush1.msra.mxu0 0.0
    %358 = vmatprep.subr.mxu0 0.0
    %359 = vmatpush1.msra.mxu0 %v224
    %360 = vmatprep.subr.mxu0 0.0
    %361 = vmatpush1.msra.mxu0 %v223
    %362 = vmatprep.subr.mxu0 0.0
    %363 = vmatpush1.msra.mxu0 %v222
    %364 = vmatprep.subr.mxu0 0.0
    %365 = vmatpush1.msra.mxu0 %v221
    %366 = vmatprep.subr.mxu0 0.0
    %367 = vmatpush2.msra.mxu0 0.0
    %368 = vmatprep.subr.mxu0 0.0
    %369 = vmatpush2.msra.mxu0 0.0
    %370 = vmatprep.subr.mxu0 0.0
    %371 = vmatpush2.msra.mxu0 0.0
    %372 = vmatprep.subr.mxu0 0.0
    %373 = vmatpush2.msra.mxu0 0.0
    %374 = vmatprep.subr.mxu0 0.0
    %375 = vmatpush2.msra.mxu0 0.0
    %376 = vmatprep.subr.mxu0 0.0
    %377 = vmatpush2.msra.mxu0 0.0
    %378 = vmatprep.subr.mxu0 0.0
    %379 = vmatpush2.msra.mxu0 0.0
    %380 = vmatprep.subr.mxu0 0.0
    %381 = vmatpush2.msra.mxu0 0.0
    %382 = vmatprep.subr.mxu0 0.0
    %383 = vmatpush2.msra.mxu0 0.0
    %384 = vmatprep.subr.mxu0 0.0
    %385 = vmatpush2.msra.mxu0 0.0
    %386 = vmatprep.subr.mxu0 0.0
    %387 = vmatpush2.msra.mxu0 0.0
    %388 = vmatprep.subr.mxu0 0.0
    %389 = vmatpush2.msra.mxu0 0.0
    %390 = vmatprep.subr.mxu0 0.0
    %391 = vmatpush2.msra.mxu0 0.0
    %392 = vmatprep.subr.mxu0 0.0
    %393 = vmatpush2.msra.mxu0 0.0
    %394 = vmatprep.subr.mxu0 0.0
    %395 = vmatpush2.msra.mxu0 0.0
    %396 = vmatprep.subr.mxu0 0.0
    %397 = vmatpush2.msra.mxu0 0.0
    %398 = vmatprep.mubr.f32.mxu0 0.0
    %399 = vmatmul.mubr.f32.gmra.mxu0 %v332
    %v400 = vpop.f32.mrf.mxu0
    %v401 = vadd.f32 %v331, %v400
    %v402 = vpop.f32.mrf.mxu0
    %403 = vdwg.mxu0
    %v404 = vxor.u32 %v401, 2147483648
    %v405 = vmul.f32 %v404, 1.442695
    %v406 = vpow.pop %v405
    %v407 = vadd.f32 %v406, 1.0
    %v408 = vrcp.pop %v407
    %v409 = vmul.f32 1.0, %v408
    %v410 = vtanh.pop %v401
    %v411 = vmul.f32 %v409, %v317
    %413 = vrot.lane.b32.xlu0 %v410, 32
    %v414 = vpop.permute.xlu0 %413
    %v416 = vmul.f32 %v409, %v414
    %418 = vrot.lane.b32.xlu0 %v416, 32
    %v419 = vpop.permute.xlu0 %418
    %v421 = vadd.f32 %v411, %v419
    %v422 = vtanh.pop %v421
    %424 = vrot.lane.b32.xlu0 %v422, 32
    %v425 = vpop.permute.xlu0 %424
    %v427 = vmul.f32 %v409, %v425
    %429 = vrot.lane.b32.xlu0 %v427, 64
    %v430 = vpop.permute.xlu0 %429
    %s432 = scalar_lea.vmem [#allocation4], 2
    %433 = vst.msk [vmem:[%s432] sm:$0x3] %vm328, %v430
    %s434 = scalar_lea.vmem [#allocation3], 4
    %v435 = vld [vmem:[%s434] sm:$0x3]
    %v436 = vsel %vm226, %v430, 0
    %438 = vmatprep.subr.mxu0 0.0
    %439 = vmatpush1.msra.mxu0 0.0
    %440 = vmatprep.subr.mxu0 0.0
    %441 = vmatpush1.msra.mxu0 0.0
    %442 = vmatprep.subr.mxu0 0.0
    %443 = vmatpush1.msra.mxu0 0.0
    %444 = vmatprep.subr.mxu0 0.0
    %445 = vmatpush1.msra.mxu0 0.0
    %446 = vmatprep.subr.mxu0 0.0
    %447 = vmatpush1.msra.mxu0 0.0
    %448 = vmatprep.subr.mxu0 0.0
    %449 = vmatpush1.msra.mxu0 0.0
    %450 = vmatprep.subr.mxu0 0.0
    %451 = vmatpush1.msra.mxu0 0.0
    %452 = vmatprep.subr.mxu0 0.0
    %453 = vmatpush1.msra.mxu0 0.0
    %454 = vmatprep.subr.mxu0 0.0
    %455 = vmatpush1.msra.mxu0 0.0
    %456 = vmatprep.subr.mxu0 0.0
    %457 = vmatpush1.msra.mxu0 0.0
    %458 = vmatprep.subr.mxu0 0.0
    %459 = vmatpush1.msra.mxu0 0.0
    %460 = vmatprep.subr.mxu0 0.0
    %461 = vmatpush1.msra.mxu0 0.0
    %462 = vmatprep.subr.mxu0 0.0
    %463 = vmatpush1.msra.mxu0 %v224
    %464 = vmatprep.subr.mxu0 0.0
    %465 = vmatpush1.msra.mxu0 %v223
    %466 = vmatprep.subr.mxu0 0.0
    %467 = vmatpush1.msra.mxu0 %v222
    %468 = vmatprep.subr.mxu0 0.0
    %469 = vmatpush1.msra.mxu0 %v221
    %470 = vmatprep.subr.mxu0 0.0
    %471 = vmatpush2.msra.mxu0 0.0
    %472 = vmatprep.subr.mxu0 0.0
    %473 = vmatpush2.msra.mxu0 0.0
    %474 = vmatprep.subr.mxu0 0.0
    %475 = vmatpush2.msra.mxu0 0.0
    %476 = vmatprep.subr.mxu0 0.0
    %477 = vmatpush2.msra.mxu0 0.0
    %478 = vmatprep.subr.mxu0 0.0
    %479 = vmatpush2.msra.mxu0 0.0
    %480 = vmatprep.subr.mxu0 0.0
    %481 = vmatpush2.msra.mxu0 0.0
    %482 = vmatprep.subr.mxu0 0.0
    %483 = vmatpush2.msra.mxu0 0.0
    %484 = vmatprep.subr.mxu0 0.0
    %485 = vmatpush2.msra.mxu0 0.0
    %486 = vmatprep.subr.mxu0 0.0
    %487 = vmatpush2.msra.mxu0 0.0
    %488 = vmatprep.subr.mxu0 0.0
    %489 = vmatpush2.msra.mxu0 0.0
    %490 = vmatprep.subr.mxu0 0.0
    %491 = vmatpush2.msra.mxu0 0.0
    %492 = vmatprep.subr.mxu0 0.0
    %493 = vmatpush2.msra.mxu0 0.0
    %494 = vmatprep.subr.mxu0 0.0
    %495 = vmatpush2.msra.mxu0 0.0
    %496 = vmatprep.subr.mxu0 0.0
    %497 = vmatpush2.msra.mxu0 0.0
    %498 = vmatprep.subr.mxu0 0.0
    %499 = vmatpush2.msra.mxu0 0.0
    %500 = vmatprep.subr.mxu0 0.0
    %501 = vmatpush2.msra.mxu0 0.0
    %502 = vmatprep.mubr.f32.mxu0 0.0
    %503 = vmatmul.mubr.f32.gmra.mxu0 %v436
    %v504 = vpop.f32.mrf.mxu0
    %v505 = vadd.f32 %v435, %v504
    %v506 = vpop.f32.mrf.mxu0
    %507 = vdwg.mxu0
    %v508 = vxor.u32 %v505, 2147483648
    %v509 = vmul.f32 %v508, 1.442695
    %v510 = vpow.pop %v509
    %v511 = vadd.f32 %v510, 1.0
    %v512 = vrcp.pop %v511
    %v513 = vmul.f32 1.0, %v512
    %v514 = vtanh.pop %v505
    %v515 = vmul.f32 %v513, %v421
    %517 = vrot.lane.b32.xlu0 %v514, 32
    %v518 = vpop.permute.xlu0 %517
    %v520 = vmul.f32 %v513, %v518
    %522 = vrot.lane.b32.xlu0 %v520, 32
    %v523 = vpop.permute.xlu0 %522
    %v525 = vadd.f32 %v515, %v523
    %v526 = vtanh.pop %v525
    %528 = vrot.lane.b32.xlu0 %v526, 32
    %v529 = vpop.permute.xlu0 %528
    %v531 = vmul.f32 %v513, %v529
    %533 = vrot.lane.b32.xlu0 %v531, 64
    %v534 = vpop.permute.xlu0 %533
    %s536 = scalar_lea.vmem [#allocation4], 4
    %537 = vst.msk [vmem:[%s536] sm:$0x3] %vm328, %v534
    %s538 = scalar_lea.vmem [#allocation3], 6
    %v539 = vld [vmem:[%s538] sm:$0x3]
    %v540 = vsel %vm226, %v534, 0
    %542 = vmatprep.subr.mxu0 0.0
    %543 = vmatpush1.msra.mxu0 0.0
    %544 = vmatprep.subr.mxu0 0.0
    %545 = vmatpush1.msra.mxu0 0.0
    %546 = vmatprep.subr.mxu0 0.0
    %547 = vmatpush1.msra.mxu0 0.0
    %548 = vmatprep.subr.mxu0 0.0
    %549 = vmatpush1.msra.mxu0 0.0
    %550 = vmatprep.subr.mxu0 0.0
    %551 = vmatpush1.msra.mxu0 0.0
    %552 = vmatprep.subr.mxu0 0.0
    %553 = vmatpush1.msra.mxu0 0.0
    %554 = vmatprep.subr.mxu0 0.0
    %555 = vmatpush1.msra.mxu0 0.0
    %556 = vmatprep.subr.mxu0 0.0
    %557 = vmatpush1.msra.mxu0 0.0
    %558 = vmatprep.subr.mxu0 0.0
    %559 = vmatpush1.msra.mxu0 0.0
    %560 = vmatprep.subr.mxu0 0.0
    %561 = vmatpush1.msra.mxu0 0.0
    %562 = vmatprep.subr.mxu0 0.0
    %563 = vmatpush1.msra.mxu0 0.0
    %564 = vmatprep.subr.mxu0 0.0
    %565 = vmatpush1.msra.mxu0 0.0
    %566 = vmatprep.subr.mxu0 0.0
    %567 = vmatpush1.msra.mxu0 %v224
    %568 = vmatprep.subr.mxu0 0.0
    %569 = vmatpush1.msra.mxu0 %v223
    %570 = vmatprep.subr.mxu0 0.0
    %571 = vmatpush1.msra.mxu0 %v222
    %572 = vmatprep.subr.mxu0 0.0
    %573 = vmatpush1.msra.mxu0 %v221
    %574 = vmatprep.subr.mxu0 0.0
    %575 = vmatpush2.msra.mxu0 0.0
    %576 = vmatprep.subr.mxu0 0.0
    %577 = vmatpush2.msra.mxu0 0.0
    %578 = vmatprep.subr.mxu0 0.0
    %579 = vmatpush2.msra.mxu0 0.0
    %580 = vmatprep.subr.mxu0 0.0
    %581 = vmatpush2.msra.mxu0 0.0
    %582 = vmatprep.subr.mxu0 0.0
    %583 = vmatpush2.msra.mxu0 0.0
    %584 = vmatprep.subr.mxu0 0.0
    %585 = vmatpush2.msra.mxu0 0.0
    %586 = vmatprep.subr.mxu0 0.0
    %587 = vmatpush2.msra.mxu0 0.0
    %588 = vmatprep.subr.mxu0 0.0
    %589 = vmatpush2.msra.mxu0 0.0
    %590 = vmatprep.subr.mxu0 0.0
    %591 = vmatpush2.msra.mxu0 0.0
    %592 = vmatprep.subr.mxu0 0.0
    %593 = vmatpush2.msra.mxu0 0.0
    %594 = vmatprep.subr.mxu0 0.0
    %595 = vmatpush2.msra.mxu0 0.0
    %596 = vmatprep.subr.mxu0 0.0
    %597 = vmatpush2.msra.mxu0 0.0
    %598 = vmatprep.subr.mxu0 0.0
    %599 = vmatpush2.msra.mxu0 0.0
    %600 = vmatprep.subr.mxu0 0.0
    %601 = vmatpush2.msra.mxu0 0.0
    %602 = vmatprep.subr.mxu0 0.0
    %603 = vmatpush2.msra.mxu0 0.0
    %604 = vmatprep.subr.mxu0 0.0
    %605 = vmatpush2.msra.mxu0 0.0
    %606 = vmatprep.mubr.f32.mxu0 0.0
    %607 = vmatmul.mubr.f32.gmra.mxu0 %v540
    %v608 = vpop.f32.mrf.mxu0
    %v609 = vadd.f32 %v539, %v608
    %v610 = vpop.f32.mrf.mxu0
    %611 = vdwg.mxu0
    %v612 = vxor.u32 %v609, 2147483648
    %v613 = vmul.f32 %v612, 1.442695
    %v614 = vpow.pop %v613
    %v615 = vadd.f32 %v614, 1.0
    %v616 = vrcp.pop %v615
    %v617 = vmul.f32 1.0, %v616
    %v618 = vtanh.pop %v609
    %v619 = vmul.f32 %v617, %v525
    %621 = vrot.lane.b32.xlu0 %v618, 32
    %v622 = vpop.permute.xlu0 %621
    %v624 = vmul.f32 %v617, %v622
    %626 = vrot.lane.b32.xlu0 %v624, 32
    %v627 = vpop.permute.xlu0 %626
    %v629 = vadd.f32 %v619, %v627
    %v630 = vtanh.pop %v629
    %632 = vrot.lane.b32.xlu0 %v630, 32
    %v633 = vpop.permute.xlu0 %632
    %v635 = vmul.f32 %v617, %v633
    %637 = vrot.lane.b32.xlu0 %v635, 64
    %v638 = vpop.permute.xlu0 %637
    %s640 = scalar_lea.vmem [#allocation4], 6
    %641 = vst.msk [vmem:[%s640] sm:$0x3] %vm328, %v638
    %s642 = scalar_lea.vmem [#allocation3], 8
    %v643 = vld [vmem:[%s642] sm:$0x3]
    %v644 = vsel %vm226, %v638, 0
    %646 = vmatprep.subr.mxu0 0.0
    %647 = vmatpush1.msra.mxu0 0.0
    %648 = vmatprep.subr.mxu0 0.0
    %649 = vmatpush1.msra.mxu0 0.0
    %650 = vmatprep.subr.mxu0 0.0
    %651 = vmatpush1.msra.mxu0 0.0
    %652 = vmatprep.subr.mxu0 0.0
    %653 = vmatpush1.msra.mxu0 0.0
    %654 = vmatprep.subr.mxu0 0.0
    %655 = vmatpush1.msra.mxu0 0.0
    %656 = vmatprep.subr.mxu0 0.0
    %657 = vmatpush1.msra.mxu0 0.0
    %658 = vmatprep.subr.mxu0 0.0
    %659 = vmatpush1.msra.mxu0 0.0
    %660 = vmatprep.subr.mxu0 0.0
    %661 = vmatpush1.msra.mxu0 0.0
    %662 = vmatprep.subr.mxu0 0.0
    %663 = vmatpush1.msra.mxu0 0.0
    %664 = vmatprep.subr.mxu0 0.0
    %665 = vmatpush1.msra.mxu0 0.0
    %666 = vmatprep.subr.mxu0 0.0
    %667 = vmatpush1.msra.mxu0 0.0
    %668 = vmatprep.subr.mxu0 0.0
    %669 = vmatpush1.msra.mxu0 0.0
    %670 = vmatprep.subr.mxu0 0.0
    %671 = vmatpush1.msra.mxu0 %v224
    %672 = vmatprep.subr.mxu0 0.0
    %673 = vmatpush1.msra.mxu0 %v223
    %674 = vmatprep.subr.mxu0 0.0
    %675 = vmatpush1.msra.mxu0 %v222
    %676 = vmatprep.subr.mxu0 0.0
    %677 = vmatpush1.msra.mxu0 %v221
    %678 = vmatprep.subr.mxu0 0.0
    %679 = vmatpush2.msra.mxu0 0.0
    %680 = vmatprep.subr.mxu0 0.0
    %681 = vmatpush2.msra.mxu0 0.0
    %682 = vmatprep.subr.mxu0 0.0
    %683 = vmatpush2.msra.mxu0 0.0
    %684 = vmatprep.subr.mxu0 0.0
    %685 = vmatpush2.msra.mxu0 0.0
    %686 = vmatprep.subr.mxu0 0.0
    %687 = vmatpush2.msra.mxu0 0.0
    %688 = vmatprep.subr.mxu0 0.0
    %689 = vmatpush2.msra.mxu0 0.0
    %690 = vmatprep.subr.mxu0 0.0
    %691 = vmatpush2.msra.mxu0 0.0
    %692 = vmatprep.subr.mxu0 0.0
    %693 = vmatpush2.msra.mxu0 0.0
    %694 = vmatprep.subr.mxu0 0.0
    %695 = vmatpush2.msra.mxu0 0.0
    %696 = vmatprep.subr.mxu0 0.0
    %697 = vmatpush2.msra.mxu0 0.0
    %698 = vmatprep.subr.mxu0 0.0
    %699 = vmatpush2.msra.mxu0 0.0
    %700 = vmatprep.subr.mxu0 0.0
    %701 = vmatpush2.msra.mxu0 0.0
    %702 = vmatprep.subr.mxu0 0.0
    %703 = vmatpush2.msra.mxu0 0.0
    %704 = vmatprep.subr.mxu0 0.0
    %705 = vmatpush2.msra.mxu0 0.0
    %706 = vmatprep.subr.mxu0 0.0
    %707 = vmatpush2.msra.mxu0 0.0
    %708 = vmatprep.subr.mxu0 0.0
    %709 = vmatpush2.msra.mxu0 0.0
    %710 = vmatprep.mubr.f32.mxu0 0.0
    %711 = vmatmul.mubr.f32.gmra.mxu0 %v644
    %v712 = vpop.f32.mrf.mxu0
    %v713 = vadd.f32 %v643, %v712
    %v714 = vpop.f32.mrf.mxu0
    %715 = vdwg.mxu0
    %v716 = vxor.u32 %v713, 2147483648
    %v717 = vmul.f32 %v716, 1.442695
    %v718 = vpow.pop %v717
    %v719 = vadd.f32 %v718, 1.0
    %v720 = vrcp.pop %v719
    %v721 = vmul.f32 1.0, %v720
    %v722 = vtanh.pop %v713
    %v723 = vmul.f32 %v721, %v629
    %725 = vrot.lane.b32.xlu0 %v722, 32
    %v726 = vpop.permute.xlu0 %725
    %v728 = vmul.f32 %v721, %v726
    %730 = vrot.lane.b32.xlu0 %v728, 32
    %v731 = vpop.permute.xlu0 %730
    %v733 = vadd.f32 %v723, %v731
    %v734 = vtanh.pop %v733
    %736 = vrot.lane.b32.xlu0 %v734, 32
    %v737 = vpop.permute.xlu0 %736
    %v739 = vmul.f32 %v721, %v737
    %741 = vrot.lane.b32.xlu0 %v739, 64
    %v742 = vpop.permute.xlu0 %741
    %s744 = scalar_lea.vmem [#allocation4], 8
    %745 = vst.msk [vmem:[%s744] sm:$0x3] %vm328, %v742
    %s746 = scalar_lea.vmem [#allocation3], 10
    %v747 = vld [vmem:[%s746] sm:$0x3]
    %v748 = vsel %vm226, %v742, 0
    %750 = vmatprep.subr.mxu0 0.0
    %751 = vmatpush1.msra.mxu0 0.0
    %752 = vmatprep.subr.mxu0 0.0
    %753 = vmatpush1.msra.mxu0 0.0
    %754 = vmatprep.subr.mxu0 0.0
    %755 = vmatpush1.msra.mxu0 0.0
    %756 = vmatprep.subr.mxu0 0.0
    %757 = vmatpush1.msra.mxu0 0.0
    %758 = vmatprep.subr.mxu0 0.0
    %759 = vmatpush1.msra.mxu0 0.0
    %760 = vmatprep.subr.mxu0 0.0
    %761 = vmatpush1.msra.mxu0 0.0
    %762 = vmatprep.subr.mxu0 0.0
    %763 = vmatpush1.msra.mxu0 0.0
    %764 = vmatprep.subr.mxu0 0.0
    %765 = vmatpush1.msra.mxu0 0.0
    %766 = vmatprep.subr.mxu0 0.0
    %767 = vmatpush1.msra.mxu0 0.0
    %768 = vmatprep.subr.mxu0 0.0
    %769 = vmatpush1.msra.mxu0 0.0
    %770 = vmatprep.subr.mxu0 0.0
    %771 = vmatpush1.msra.mxu0 0.0
    %772 = vmatprep.subr.mxu0 0.0
    %773 = vmatpush1.msra.mxu0 0.0
    %774 = vmatprep.subr.mxu0 0.0
    %775 = vmatpush1.msra.mxu0 %v224
    %776 = vmatprep.subr.mxu0 0.0
    %777 = vmatpush1.msra.mxu0 %v223
    %778 = vmatprep.subr.mxu0 0.0
    %779 = vmatpush1.msra.mxu0 %v222
    %780 = vmatprep.subr.mxu0 0.0
    %781 = vmatpush1.msra.mxu0 %v221
    %782 = vmatprep.subr.mxu0 0.0
    %783 = vmatpush2.msra.mxu0 0.0
    %784 = vmatprep.subr.mxu0 0.0
    %785 = vmatpush2.msra.mxu0 0.0
    %786 = vmatprep.subr.mxu0 0.0
    %787 = vmatpush2.msra.mxu0 0.0
    %788 = vmatprep.subr.mxu0 0.0
    %789 = vmatpush2.msra.mxu0 0.0
    %790 = vmatprep.subr.mxu0 0.0
    %791 = vmatpush2.msra.mxu0 0.0
    %792 = vmatprep.subr.mxu0 0.0
    %793 = vmatpush2.msra.mxu0 0.0
    %794 = vmatprep.subr.mxu0 0.0
    %795 = vmatpush2.msra.mxu0 0.0
    %796 = vmatprep.subr.mxu0 0.0
    %797 = vmatpush2.msra.mxu0 0.0
    %798 = vmatprep.subr.mxu0 0.0
    %799 = vmatpush2.msra.mxu0 0.0
    %800 = vmatprep.subr.mxu0 0.0
    %801 = vmatpush2.msra.mxu0 0.0
    %802 = vmatprep.subr.mxu0 0.0
    %803 = vmatpush2.msra.mxu0 0.0
    %804 = vmatprep.subr.mxu0 0.0
    %805 = vmatpush2.msra.mxu0 0.0
    %806 = vmatprep.subr.mxu0 0.0
    %807 = vmatpush2.msra.mxu0 0.0
    %808 = vmatprep.subr.mxu0 0.0
    %809 = vmatpush2.msra.mxu0 0.0
    %810 = vmatprep.subr.mxu0 0.0
    %811 = vmatpush2.msra.mxu0 0.0
    %812 = vmatprep.subr.mxu0 0.0
    %813 = vmatpush2.msra.mxu0 0.0
    %814 = vmatprep.mubr.f32.mxu0 0.0
    %815 = vmatmul.mubr.f32.gmra.mxu0 %v748
    %v816 = vpop.f32.mrf.mxu0
    %v817 = vadd.f32 %v747, %v816
    %v818 = vpop.f32.mrf.mxu0
    %819 = vdwg.mxu0
    %v820 = vxor.u32 %v817, 2147483648
    %v821 = vmul.f32 %v820, 1.442695
    %v822 = vpow.pop %v821
    %v823 = vadd.f32 %v822, 1.0
    %v824 = vrcp.pop %v823
    %v825 = vmul.f32 1.0, %v824
    %v826 = vtanh.pop %v817
    %v827 = vmul.f32 %v825, %v733
    %829 = vrot.lane.b32.xlu0 %v826, 32
    %v830 = vpop.permute.xlu0 %829
    %v832 = vmul.f32 %v825, %v830
    %834 = vrot.lane.b32.xlu0 %v832, 32
    %v835 = vpop.permute.xlu0 %834
    %v837 = vadd.f32 %v827, %v835
    %v838 = vtanh.pop %v837
    %840 = vrot.lane.b32.xlu0 %v838, 32
    %v841 = vpop.permute.xlu0 %840
    %v843 = vmul.f32 %v825, %v841
    %845 = vrot.lane.b32.xlu0 %v843, 64
    %v846 = vpop.permute.xlu0 %845
    %s848 = scalar_lea.vmem [#allocation4], 10
    %849 = vst.msk [vmem:[%s848] sm:$0x3] %vm328, %v846
    %s850 = scalar_lea.vmem [#allocation3], 12
    %v851 = vld [vmem:[%s850] sm:$0x3]
    %v852 = vsel %vm226, %v846, 0
    %854 = vmatprep.subr.mxu0 0.0
    %855 = vmatpush1.msra.mxu0 0.0
    %856 = vmatprep.subr.mxu0 0.0
    %857 = vmatpush1.msra.mxu0 0.0
    %858 = vmatprep.subr.mxu0 0.0
    %859 = vmatpush1.msra.mxu0 0.0
    %860 = vmatprep.subr.mxu0 0.0
    %861 = vmatpush1.msra.mxu0 0.0
    %862 = vmatprep.subr.mxu0 0.0
    %863 = vmatpush1.msra.mxu0 0.0
    %864 = vmatprep.subr.mxu0 0.0
    %865 = vmatpush1.msra.mxu0 0.0
    %866 = vmatprep.subr.mxu0 0.0
    %867 = vmatpush1.msra.mxu0 0.0
    %868 = vmatprep.subr.mxu0 0.0
    %869 = vmatpush1.msra.mxu0 0.0
    %870 = vmatprep.subr.mxu0 0.0
    %871 = vmatpush1.msra.mxu0 0.0
    %872 = vmatprep.subr.mxu0 0.0
    %873 = vmatpush1.msra.mxu0 0.0
    %874 = vmatprep.subr.mxu0 0.0
    %875 = vmatpush1.msra.mxu0 0.0
    %876 = vmatprep.subr.mxu0 0.0
    %877 = vmatpush1.msra.mxu0 0.0
    %878 = vmatprep.subr.mxu0 0.0
    %879 = vmatpush1.msra.mxu0 %v224
    %880 = vmatprep.subr.mxu0 0.0
    %881 = vmatpush1.msra.mxu0 %v223
    %882 = vmatprep.subr.mxu0 0.0
    %883 = vmatpush1.msra.mxu0 %v222
    %884 = vmatprep.subr.mxu0 0.0
    %885 = vmatpush1.msra.mxu0 %v221
    %886 = vmatprep.subr.mxu0 0.0
    %887 = vmatpush2.msra.mxu0 0.0
    %888 = vmatprep.subr.mxu0 0.0
    %889 = vmatpush2.msra.mxu0 0.0
    %890 = vmatprep.subr.mxu0 0.0
    %891 = vmatpush2.msra.mxu0 0.0
    %892 = vmatprep.subr.mxu0 0.0
    %893 = vmatpush2.msra.mxu0 0.0
    %894 = vmatprep.subr.mxu0 0.0
    %895 = vmatpush2.msra.mxu0 0.0
    %896 = vmatprep.subr.mxu0 0.0
    %897 = vmatpush2.msra.mxu0 0.0
    %898 = vmatprep.subr.mxu0 0.0
    %899 = vmatpush2.msra.mxu0 0.0
    %900 = vmatprep.subr.mxu0 0.0
    %901 = vmatpush2.msra.mxu0 0.0
    %902 = vmatprep.subr.mxu0 0.0
    %903 = vmatpush2.msra.mxu0 0.0
    %904 = vmatprep.subr.mxu0 0.0
    %905 = vmatpush2.msra.mxu0 0.0
    %906 = vmatprep.subr.mxu0 0.0
    %907 = vmatpush2.msra.mxu0 0.0
    %908 = vmatprep.subr.mxu0 0.0
    %909 = vmatpush2.msra.mxu0 0.0
    %910 = vmatprep.subr.mxu0 0.0
    %911 = vmatpush2.msra.mxu0 0.0
    %912 = vmatprep.subr.mxu0 0.0
    %913 = vmatpush2.msra.mxu0 0.0
    %914 = vmatprep.subr.mxu0 0.0
    %915 = vmatpush2.msra.mxu0 0.0
    %916 = vmatprep.subr.mxu0 0.0
    %917 = vmatpush2.msra.mxu0 0.0
    %918 = vmatprep.mubr.f32.mxu0 0.0
    %919 = vmatmul.mubr.f32.gmra.mxu0 %v852
    %v920 = vpop.f32.mrf.mxu0
    %v921 = vadd.f32 %v851, %v920
    %v922 = vpop.f32.mrf.mxu0
    %923 = vdwg.mxu0
    %v924 = vxor.u32 %v921, 2147483648
    %v925 = vmul.f32 %v924, 1.442695
    %v926 = vpow.pop %v925
    %v927 = vadd.f32 %v926, 1.0
    %v928 = vrcp.pop %v927
    %v929 = vmul.f32 1.0, %v928
    %v930 = vtanh.pop %v921
    %v931 = vmul.f32 %v929, %v837
    %933 = vrot.lane.b32.xlu0 %v930, 32
    %v934 = vpop.permute.xlu0 %933
    %v936 = vmul.f32 %v929, %v934
    %938 = vrot.lane.b32.xlu0 %v936, 32
    %v939 = vpop.permute.xlu0 %938
    %v941 = vadd.f32 %v931, %v939
    %v942 = vtanh.pop %v941
    %944 = vrot.lane.b32.xlu0 %v942, 32
    %v945 = vpop.permute.xlu0 %944
    %v947 = vmul.f32 %v929, %v945
    %949 = vrot.lane.b32.xlu0 %v947, 64
    %v950 = vpop.permute.xlu0 %949
    %s952 = scalar_lea.vmem [#allocation4], 12
    %953 = vst.msk [vmem:[%s952] sm:$0x3] %vm328, %v950
    %s954 = scalar_lea.vmem [#allocation3], 14
    %v955 = vld [vmem:[%s954] sm:$0x3]
    %v956 = vsel %vm226, %v950, 0
    %958 = vmatprep.subr.mxu0 0.0
    %959 = vmatpush1.msra.mxu0 0.0
    %960 = vmatprep.subr.mxu0 0.0
    %961 = vmatpush1.msra.mxu0 0.0
    %962 = vmatprep.subr.mxu0 0.0
    %963 = vmatpush1.msra.mxu0 0.0
    %964 = vmatprep.subr.mxu0 0.0
    %965 = vmatpush1.msra.mxu0 0.0
    %966 = vmatprep.subr.mxu0 0.0
    %967 = vmatpush1.msra.mxu0 0.0
    %968 = vmatprep.subr.mxu0 0.0
    %969 = vmatpush1.msra.mxu0 0.0
    %970 = vmatprep.subr.mxu0 0.0
    %971 = vmatpush1.msra.mxu0 0.0
    %972 = vmatprep.subr.mxu0 0.0
    %973 = vmatpush1.msra.mxu0 0.0
    %974 = vmatprep.subr.mxu0 0.0
    %975 = vmatpush1.msra.mxu0 0.0
    %976 = vmatprep.subr.mxu0 0.0
    %977 = vmatpush1.msra.mxu0 0.0
    %978 = vmatprep.subr.mxu0 0.0
    %979 = vmatpush1.msra.mxu0 0.0
    %980 = vmatprep.subr.mxu0 0.0
    %981 = vmatpush1.msra.mxu0 0.0
    %982 = vmatprep.subr.mxu0 0.0
    %983 = vmatpush1.msra.mxu0 %v224
    %984 = vmatprep.subr.mxu0 0.0
    %985 = vmatpush1.msra.mxu0 %v223
    %986 = vmatprep.subr.mxu0 0.0
    %987 = vmatpush1.msra.mxu0 %v222
    %988 = vmatprep.subr.mxu0 0.0
    %989 = vmatpush1.msra.mxu0 %v221
    %990 = vmatprep.subr.mxu0 0.0
    %991 = vmatpush2.msra.mxu0 0.0
    %992 = vmatprep.subr.mxu0 0.0
    %993 = vmatpush2.msra.mxu0 0.0
    %994 = vmatprep.subr.mxu0 0.0
    %995 = vmatpush2.msra.mxu0 0.0
    %996 = vmatprep.subr.mxu0 0.0
    %997 = vmatpush2.msra.mxu0 0.0
    %998 = vmatprep.subr.mxu0 0.0
    %999 = vmatpush2.msra.mxu0 0.0
    %1000 = vmatprep.subr.mxu0 0.0
    %1001 = vmatpush2.msra.mxu0 0.0
    %1002 = vmatprep.subr.mxu0 0.0
    %1003 = vmatpush2.msra.mxu0 0.0
    %1004 = vmatprep.subr.mxu0 0.0
    %1005 = vmatpush2.msra.mxu0 0.0
    %1006 = vmatprep.subr.mxu0 0.0
    %1007 = vmatpush2.msra.mxu0 0.0
    %1008 = vmatprep.subr.mxu0 0.0
    %1009 = vmatpush2.msra.mxu0 0.0
    %1010 = vmatprep.subr.mxu0 0.0
    %1011 = vmatpush2.msra.mxu0 0.0
    %1012 = vmatprep.subr.mxu0 0.0
    %1013 = vmatpush2.msra.mxu0 0.0
    %1014 = vmatprep.subr.mxu0 0.0
    %1015 = vmatpush2.msra.mxu0 0.0
    %1016 = vmatprep.subr.mxu0 0.0
    %1017 = vmatpush2.msra.mxu0 0.0
    %1018 = vmatprep.subr.mxu0 0.0
    %1019 = vmatpush2.msra.mxu0 0.0
    %1020 = vmatprep.subr.mxu0 0.0
    %1021 = vmatpush2.msra.mxu0 0.0
    %1022 = vmatprep.mubr.f32.mxu0 0.0
    %1023 = vmatmul.mubr.f32.gmra.mxu0 %v956
    %v1024 = vpop.f32.mrf.mxu0
    %v1025 = vadd.f32 %v955, %v1024
    %v1026 = vpop.f32.mrf.mxu0
    %1027 = vdwg.mxu0
    %v1028 = vxor.u32 %v1025, 2147483648
    %v1029 = vmul.f32 %v1028, 1.442695
    %v1030 = vpow.pop %v1029
    %v1031 = vadd.f32 %v1030, 1.0
    %v1032 = vrcp.pop %v1031
    %v1033 = vmul.f32 1.0, %v1032
    %v1034 = vtanh.pop %v1025
    %v1035 = vmul.f32 %v1033, %v941
    %1037 = vrot.lane.b32.xlu0 %v1034, 32
    %v1038 = vpop.permute.xlu0 %1037
    %v1040 = vmul.f32 %v1033, %v1038
    %1042 = vrot.lane.b32.xlu0 %v1040, 32
    %v1043 = vpop.permute.xlu0 %1042
    %v1045 = vadd.f32 %v1035, %v1043
    %v1046 = vtanh.pop %v1045
    %1048 = vrot.lane.b32.xlu0 %v1046, 32
    %v1049 = vpop.permute.xlu0 %1048
    %v1051 = vmul.f32 %v1033, %v1049
    %1053 = vrot.lane.b32.xlu0 %v1051, 64
    %v1054 = vpop.permute.xlu0 %1053
    %s1056 = scalar_lea.vmem [#allocation4], 14
    %1057 = vst.msk [vmem:[%s1056] sm:$0x3] %vm328, %v1054
    %vm1058 = vcmask 123904
    %1059 = vst.msk [vmem:[#allocation9] sm:$0x3] %vm1058, %v1054
    %1060 = vrot.lane.b32.xlu0 %v1051, 48
    %v1061 = vpop.permute.xlu0 %1060
    %s1063 = scalar_lea.vmem [#allocation9], 2
    %1064 = vst.msk [vmem:[%s1063] sm:$0x3] %vm1058, %v1061
    %1066 = vrot.lane.b32.xlu0 %v1045, 96
    %v1067 = vpop.permute.xlu0 %1066
    %1069 = vst.msk [vmem:[#allocation11] sm:$0x3] %vm1058, %v1067
    %1070 = vrot.lane.b32.xlu0 %v1045, 80
    %v1071 = vpop.permute.xlu0 %1070
    %s1073 = scalar_lea.vmem [#allocation11], 2
    %1074 = vst.msk [vmem:[%s1073] sm:$0x3] %vm1058, %v1071
    %v1075 = vld [vmem:[#allocation4] sm:$0xff]
    %v1076 = vld [vmem:[#allocation4 + $0x8] sm:$0xff]
    %v1078 = vrot.slane %v1076, 6
    %v1081 = vrot.slane %v1075, 2
    %1082 = vrot.lane.b32.xlu0 %v1081, 32
    %v1083 = vpop.permute.xlu0 %1082
    %v1085 = vrot.slane %v1076, 4
    %1086 = vrot.lane.b32.xlu0 %v1085, 32
    %v1087 = vpop.permute.xlu0 %1086
    %v1089 = vrot.slane %v1075, 4
    %1090 = vrot.lane.b32.xlu0 %v1089, 64
    %v1091 = vpop.permute.xlu0 %1090
    %v1093 = vrot.slane %v1076, 2
    %1094 = vrot.lane.b32.xlu0 %v1093, 64
    %v1095 = vpop.permute.xlu0 %1094
    %v1097 = vrot.slane %v1075, 6
    %1098 = vrot.lane.b32.xlu0 %v1097, 96
    %v1099 = vpop.permute.xlu0 %1098
    %1101 = vrot.lane.b32.xlu0 %v1076, 96
    %v1102 = vpop.permute.xlu0 %1101
    %1105 = vrot.lane.b32.xlu0 %v1093, 32
    %v1106 = vpop.permute.xlu0 %1105
    %1108 = vrot.lane.b32.xlu0 %v1089, 32
    %v1109 = vpop.permute.xlu0 %1108
    %1111 = vrot.lane.b32.xlu0 %v1085, 64
    %v1112 = vpop.permute.xlu0 %1111
    %1114 = vrot.lane.b32.xlu0 %v1081, 64
    %v1115 = vpop.permute.xlu0 %1114
    %1117 = vrot.lane.b32.xlu0 %v1078, 96
    %v1118 = vpop.permute.xlu0 %1117
    %1120 = vrot.lane.b32.xlu0 %v1075, 96
    %v1121 = vpop.permute.xlu0 %1120
    %vm1123 = vcmask 130048
    %v1124 = vsel %vm1123, %v1075, %v1078
    %v1125 = vsel %vm226, %v1124, %v1083
    %vm1126 = vcmask 392192
    %v1127 = vsel %vm1126, %v1125, %v1087
    %vm1128 = vcmask 523264
    %v1129 = vsel %vm1128, %v1127, %v1091
    %vm1130 = vcmask 654336
    %v1131 = vsel %vm1130, %v1129, %v1095
    %vm1132 = vcmask 785408
    %v1133 = vsel %vm1132, %v1131, %v1099
    %vm1134 = vcmask 916480
    %v1135 = vsel %vm1134, %v1133, %v1102
    %v1136 = vsel %vm1123, %v1076, %v1097
    %v1137 = vsel %vm226, %v1136, %v1106
    %v1138 = vsel %vm1126, %v1137, %v1109
    %v1139 = vsel %vm1128, %v1138, %v1112
    %v1140 = vsel %vm1130, %v1139, %v1115
    %v1141 = vsel %vm1132, %v1140, %v1118
    %v1142 = vsel %vm1134, %v1141, %v1121
    %v1145 = vcombine.low %v1135, %v1142
    %v1147 = vunpack.c.l.s4 1983009808
    %v1148 = vunpack.c.0.s8 %v1147
    %v1149 = vlaneseq
    %v1150 = vshrl.u32 %v1149, 7
    %v1151 = vsub.s32 %v1148, %v1150
    %v1152 = vrot.slane %v1145, %v1151
    %1154 = vst [vmem:[#allocation8] sm:$0xf] %v1152
    // Predicated region
    $region22: #{tpu_custom_call.1} parent=1 // pred_check
      _
    $region23: #{tpu_custom_call.1} parent=1 // pred_check_branch
      %1156 = sbr.rel (0) target = $region25
    $region24: #{tpu_custom_call.1} parent=1 // pred_region
      %s1158 = ssub.s32 64, 64
      %1159 = vsyncadd [#allocation7], %s1158
      %s1161 = sshll.u32 [#allocation8], 4
      %s1162 = int_to_ptr.vmem [resolvable:$true] %s1161
      %1164 = dma.vmem_to_hbm [thread:$0]  %s1162, 64, %s4, [#allocation7]
    $region25: #{tpu_custom_call.1} parent=1 // pred_fallthru
      _
    // Predicated region
    $region26: #{tpu_custom_call.1} parent=1 // pred_check
      _
    $region27: #{tpu_custom_call.1} parent=1 // pred_check_branch
      %1166 = sbr.rel (0) target = $region29
    $region28: #{tpu_custom_call.1} parent=1 // pred_region
      %s1168 = ssub.s32 64, 64
      %1169 = vsyncadd [#allocation10], %s1168
      %s1170 = sshll.u32 [#allocation9], 4
      %s1171 = int_to_ptr.vmem [resolvable:$true] %s1170
      %1176 = dma.vmem_to_hbm [thread:$0]  %s1171, 64, %s5, [#allocation10], 32, 32, 2
    $region29: #{tpu_custom_call.1} parent=1 // pred_fallthru
      _
    // Predicated region
    $region30: #{tpu_custom_call.1} parent=1 // pred_check
      _
    $region31: #{tpu_custom_call.1} parent=1 // pred_check_branch
      %1178 = sbr.rel (0) target = $region33
    $region32: #{tpu_custom_call.1} parent=1 // pred_region
      %s1180 = ssub.s32 64, 64
      %1181 = vsyncadd [#allocation10], %s1180
      %s1182 = sshll.u32 [#allocation11], 4
      %s1183 = int_to_ptr.vmem [resolvable:$true] %s1182
      %1188 = dma.vmem_to_hbm [thread:$0]  %s1183, 64, %s6, [#allocation10], 32, 32, 2
    $region33: #{tpu_custom_call.1} parent=1 // pred_fallthru
      _
    // Predicated region
    $region34: #{tpu_custom_call.1} parent=1 // pred_check
      _
    $region35: #{tpu_custom_call.1} parent=1 // pred_check_branch
      %1190 = sbr.rel (0) target = $region37
    $region36: #{tpu_custom_call.1} parent=1 // pred_region
      %1191 = dma.done [#allocation7], 64
    $region37: #{tpu_custom_call.1} parent=1 // pred_fallthru
      _
    // Predicated region
    $region38: #{tpu_custom_call.1} parent=1 // pred_check
      _
    $region39: #{tpu_custom_call.1} parent=1 // pred_check_branch
      %1193 = sbr.rel (0) target = $region41
    $region40: #{tpu_custom_call.1} parent=1 // pred_region
      %1194 = dma.done [#allocation10], 64
    $region41: #{tpu_custom_call.1} parent=1 // pred_fallthru
      _
    // Predicated region
    $region42: #{tpu_custom_call.1} parent=1 // pred_check
      _
    $region43: #{tpu_custom_call.1} parent=1 // pred_check_branch
      %1196 = sbr.rel (0) target = $region45
    $region44: #{tpu_custom_call.1} parent=1 // pred_region
      %1197 = dma.done [#allocation10], 64
    $region45: #{tpu_custom_call.1} parent=1 // pred_fallthru
      _
    %1198 = vsyncpa [#allocation6], 1
    %1199 = vsyncpa [#allocation7], 1
    %1200 = vsyncpa [#allocation10], 1

</llo_original>
